<compile_context>
chip_gen: v7x
topology: tpu7x:2x2x1
jax: 0.10.0
libtpu: 0.0.40
codegen_flags: <defaults>
</compile_context>

<pallas_src>
import functools

import numpy as np

import jax
import jax.numpy as jnp
from jax import lax
from jax.experimental import pallas as pl
from jax.experimental.pallas import tpu as pltpu


def _prototype_kernel(x_ref, k_ref, sel_ref, o_ref):
    """One row-block of batches.

    x_ref:   (BB, M)     M = C*F*T on the lane axis
    k_ref:   (P,  M)     prototypes (block constant across the grid)
    sel_ref: (M,  Q)     0 / (1/C) selection matrix (block constant across the grid)
    o_ref:   (BB*P, Q)   lane-dense output slab (Q = F padded to a multiple of 128)
    """
    bb, M = x_ref.shape
    n_proto = k_ref.shape[0]

    x = x_ref[...].astype(jnp.float32)                        # (BB, M)
    k = k_ref[...].astype(jnp.float32)                        # (P, M)

    # F.normalize(kernel.unsqueeze(0), p=2), default dim=1 == prototype axis P:
    #   1 / max(||k||, 1e-12) == rsqrt(max(sum k^2, 1e-24))  -> single EUP rsqrt.
    # (Recomputed per grid step; the grid has at most 2 steps and this is C*F*T work
    #  vs BB*P*C*F*T for the distances, so it is noise.)
    sumsq = jnp.sum(k * k, axis=0, keepdims=True)             # (1, M)
    k_n = k * lax.rsqrt(jnp.maximum(sumsq, 1e-24))            # (P, M)

    # Squared differences; every remaining reduction rides the MXU below.
    diff = x[:, None, :] - k_n[None, :, :]                    # (BB, P, M)
    s2 = (diff * diff).reshape(bb * n_proto, M)               # free leading-dim merge

    # One MXU matmul fuses: sum over channels c, sum over frames t of each freq bin,
    # scatter of bin f to output lane f, and the 1/C channel mean (pre-folded in sel).
    # sel is exactly bf16-representable, so HIGHEST keeps the result f32-accurate;
    # the MXU has huge slack at these shapes, so the extra passes are free.
    o_ref[...] = jnp.dot(
        s2, sel_ref[...],
        precision=lax.Precision.HIGHEST,
        preferred_element_type=jnp.float32,
    ).astype(o_ref.dtype)


@functools.lru_cache(maxsize=None)
def _selection_matrix(C, F, T, Q):
    """sel[c*F*T + f*T + t, q] = (f == q) / C.

    Host-built constant (numpy): zero in-kernel VALU cost and, under jit, zero extra
    runtime HLOs; as a pallas_call input it is a small, pipelined DMA.
    """
    m = np.arange(C * F * T)
    f_of_m = (m // T) % F
    sel = (f_of_m[:, None] == np.arange(Q)[None, :]).astype(np.float32) / float(C)
    return jnp.asarray(sel)


def _batch_block(B):
    # Two row-blocks let both v7x TensorCores work (v5e/v6e have a single TC); only
    # split when each half still satisfies the sublane multiple-of-8 rule and B is
    # big enough that the extra ~0.35us pipeline step is amortized.
    if B >= 16 and B % 16 == 0:
        return B // 2
    return B


def _check_vmem_budget(BB, P, M, Q, in_itemsize):
    f32 = 4
    # Double-buffered I/O blocks + f32 working set (x, k_n, diff, diff^2).
    io_bytes = 2 * (BB * M + P * M + M * Q + BB * P * Q) * max(in_itemsize, f32)
    work_bytes = (BB * M + P * M + 2 * BB * P * M) * f32
    total = io_bytes + work_bytes
    limit = 32 * 1024 * 1024   # v7x default scoped VMEM; v5e/v6e allow more.
    if total > limit:
        raise ValueError(
            f"PrototypeLayer Pallas block does not fit VMEM "
            f"(~{total / 2**20:.1f} MiB > 32 MiB). Tile the prototype/batch axes "
            "(expanded-square form, reduction axis last in the grid) before scaling up.")


def prototype_layer(x, kernel):
    """dist[b,p,f] = mean_c sum_t (x[b,c,f,t] - normalize_P(kernel)[p,c,f,t])^2."""
    B, C, F, T = x.shape
    P = kernel.shape[0]
    assert kernel.shape == (P, C, F, T)
    M = C * F * T
    Q = pl.cdiv(F, 128) * 128          # output lanes, padded to a multiple of 128

    BB = _batch_block(B)
    _check_vmem_budget(BB, P, M, Q, jnp.dtype(x.dtype).itemsize)

    # Layout plumbing only: contiguous reshapes, no transposes, no compute hoisting.
    x_r = x.reshape(B, M)
    k_r = kernel.reshape(P, M)
    sel = _selection_matrix(C, F, T, Q)

    out_padded = pl.pallas_call(
        _prototype_kernel,
        out_shape=jax.ShapeDtypeStruct((B * P, Q), x.dtype),
        grid=(B // BB,),
        in_specs=[
            pl.BlockSpec((BB, M), lambda i: (i, 0)),
            pl.BlockSpec((P, M), lambda i: (0, 0)),   # prototypes VMEM-resident
            pl.BlockSpec((M, Q), lambda i: (0, 0)),   # selection matrix VMEM-resident
        ],
        out_specs=pl.BlockSpec((BB * P, Q), lambda i: (i, 0)),
        compiler_params=pltpu.CompilerParams(
            dimension_semantics=("parallel",)),
    )(x_r, k_r, sel)

    # Crop the lane padding and restore (B, P, F). (Consumers that can take the
    # lane-dense (B*P, 128) slab directly should, to save the standalone slice HLO.)
    return out_padded[:, :F].reshape(B, P, F)


def _reference(x, kernel):
    # Faithful JAX translation of the PyTorch forward.
    norm = jnp.sqrt(jnp.sum(kernel * kernel, axis=0, keepdims=True))
    k_n = kernel / jnp.maximum(norm, 1e-12)
    diff = x[:, None] - k_n[None]                          # (B, P, C, F, T)
    return jnp.mean(jnp.sum(diff * diff, axis=-1), axis=2)


if __name__ == "__main__":
    key = jax.random.PRNGKey(0)
    kx, kk = jax.random.split(key)

    # n_prototypes=8, n_chan_latent=4, n_freq_latent=16, n_frames_latent=8, batch=2
    B, P, C, F, T = 2, 8, 4, 16, 8

    x = jax.random.normal(kx, (B, C, F, T), dtype=jnp.float32)
    # module __init__ uses torch.rand -> uniform [0, 1)
    kernel = jax.random.uniform(kk, (P, C, F, T), dtype=jnp.float32)

    out = jax.block_until_ready(prototype_layer(x, kernel))

    ref = _reference(x, kernel)
    assert out.shape == (B, P, F)
    assert jnp.allclose(out, ref, atol=1e-5, rtol=1e-5)
    print("KERNEL_OK")
</pallas_src>

<mosaic_0001>
module attributes {stable_mosaic.version = 11 : i64} {
  func.func @_prototype_kernel(%arg0: i32, %arg1: memref<2x512xf32, #tpu.memory_space<vmem>>, %arg2: memref<8x512xf32, #tpu.memory_space<vmem>>, %arg3: memref<512x128xf32, #tpu.memory_space<vmem>>, %arg4: memref<16x128xf32, #tpu.memory_space<vmem>>) attributes {dimension_semantics = [#tpu.dimension_semantics<parallel>], iteration_bounds = array<i64: 1>, scalar_prefetch = 0 : i64, scratch_operands = 0 : i64, tpu.core_type = #tpu.core_type<tc>, window_params = [{transform_indices = @transform_0, window_bounds = array<i64: 2, 512>}, {pipeline_mode = #tpu.pipeline_mode<synchronous>, transform_indices = @transform_1, window_bounds = array<i64: 8, 512>}, {pipeline_mode = #tpu.pipeline_mode<synchronous>, transform_indices = @transform_2, window_bounds = array<i64: 512, 128>}, {transform_indices = @transform_3, window_bounds = array<i64: 16, 128>}]} {
    %c0 = arith.constant 0 : index
    %c0_0 = arith.constant 0 : index
    %0 = vector.load %arg1[%c0, %c0_0] : memref<2x512xf32, #tpu.memory_space<vmem>>, vector<2x512xf32>
    %c0_1 = arith.constant 0 : index
    %c0_2 = arith.constant 0 : index
    %1 = vector.load %arg2[%c0_1, %c0_2] : memref<8x512xf32, #tpu.memory_space<vmem>>, vector<8x512xf32>
    %2 = arith.mulf %1, %1 : vector<8x512xf32>
    %cst = arith.constant dense<0.000000e+00> : vector<512xf32>
    %3 = vector.multi_reduction <add>, %2, %cst [0] : vector<8x512xf32> to vector<512xf32>
    %4 = vector.shape_cast %3 : vector<512xf32> to vector<1x512xf32>
    %cst_3 = arith.constant 1.000000e-24 : f32
    %5 = vector.broadcast %cst_3 : f32 to vector<1x512xf32>
    %6 = arith.maximumf %4, %5 : vector<1x512xf32>
    %7 = math.rsqrt %6 : vector<1x512xf32>
    %8 = vector.broadcast %7 : vector<1x512xf32> to vector<8x512xf32>
    %9 = arith.mulf %1, %8 : vector<8x512xf32>
    %10 = vector.shape_cast %0 : vector<2x512xf32> to vector<2x1x512xf32>
    %11 = vector.shape_cast %9 : vector<8x512xf32> to vector<1x8x512xf32>
    %12 = vector.broadcast %10 : vector<2x1x512xf32> to vector<2x8x512xf32>
    %13 = vector.broadcast %11 : vector<1x8x512xf32> to vector<2x8x512xf32>
    %14 = arith.subf %12, %13 : vector<2x8x512xf32>
    %15 = arith.mulf %14, %14 : vector<2x8x512xf32>
    %16 = vector.shape_cast %15 : vector<2x8x512xf32> to vector<16x512xf32>
    %c0_4 = arith.constant 0 : index
    %c0_5 = arith.constant 0 : index
    %17 = vector.load %arg3[%c0_4, %c0_5] : memref<512x128xf32, #tpu.memory_space<vmem>>, vector<512x128xf32>
    %cst_6 = arith.constant dense<0.000000e+00> : vector<16x128xf32>
    %18 = tpu.matmul %16, %17, %cst_6 {dimension_numbers = #tpu.dot_dimension_numbers<[1], [0], [0], [1], [0, 0, 1, 1], [], []>, precision = #tpu.contract_precision<fp32>} : vector<16x512xf32>, vector<512x128xf32>, vector<16x128xf32> -> vector<16x128xf32>
    %c0_7 = arith.constant 0 : index
    %c0_8 = arith.constant 0 : index
    %19 = vector.load %arg4[%c0_7, %c0_8] : memref<16x128xf32, #tpu.memory_space<vmem>>, vector<16x128xf32>
    tpu.vector_store %arg4[%c0_7, %c0_8], %18 {strides = array<i32>} : memref<16x128xf32, #tpu.memory_space<vmem>>, vector<16x128xf32>,
    return
  }
  func.func @transform_0(%arg0: i32) -> (i32, i32) {
    %c0_i32 = arith.constant 0 : i32
    %c0_i32_0 = arith.constant 0 : i32
    return %arg0, %c0_i32 : i32, i32
  }
  func.func @transform_1(%arg0: i32) -> (i32, i32) {
    %c0_i32 = arith.constant 0 : i32
    %c0_i32_0 = arith.constant 0 : i32
    %c0_i32_1 = arith.constant 0 : i32
    return %c0_i32, %c0_i32_0 : i32, i32
  }
  func.func @transform_2(%arg0: i32) -> (i32, i32) {
    %c0_i32 = arith.constant 0 : i32
    %c0_i32_0 = arith.constant 0 : i32
    %c0_i32_1 = arith.constant 0 : i32
    return %c0_i32, %c0_i32_0 : i32, i32
  }
  func.func @transform_3(%arg0: i32) -> (i32, i32) {
    %c0_i32 = arith.constant 0 : i32
    %c0_i32_0 = arith.constant 0 : i32
    return %arg0, %c0_i32 : i32, i32
  }
}

</mosaic_0001>

<llo_original>
// kernel: tpu_custom_call.1
$region0: #{tpu_custom_call.1}
  #allocation0 [shape = 'u32[]', space=smem, size = 0x4, offset = 0x4, fixed_abs, tag = 'smem constant byte address 0x4 - core index']
  #allocation1 [shape = 'u32[144,128]{1,0:T(1,128)}', space=vmem, size = 0x12000, scoped, tag = 'internal scratch']
  %s0 = inlined_call_operand.hbm [shape: f32[2,512], index: 0, kind: input, shape index: {}]
  %s1 = inlined_call_operand.hbm [shape: f32[8,512], index: 1, kind: input, shape index: {}]
  %s2 = inlined_call_operand.hbm [shape: f32[512,128], index: 2, kind: input, shape index: {}]
  %s3 = inlined_call_operand.hbm [shape: f32[16,128], index: 3, kind: output, shape index: {}]
  %s4 = sld [smem:[#allocation0]]
  $region34: #{tpu_custom_call.1} parent=0
    _
  %s6 = ssub.s32 1, %s4
  %s7 = scalar_select 0, %s6, %s4
  $region1: #{tpu_custom_call.1} parent=0
    #allocation2 [shape = 'u8[4096]{0}', space=vmem, size = 0x1000, scoped, tag = 'input window, operand 0, single buffered']
    #allocation3 [shape = 's32[1]{0}', space=sflag, size = 0x4, scoped, tag = 'scoped memory for tpu_custom_call.1']
    #allocation4 [shape = 's32[1]{0}', space=sflag, size = 0x4, scoped, tag = 'scoped memory for tpu_custom_call.1']
    #allocation5 [shape = 'u8[16384]{0}', space=vmem, size = 0x4000, scoped, tag = 'input window, operand 1, single buffered']
    #allocation6 [shape = 's32[1]{0}', space=sflag, size = 0x4, scoped, tag = 'scoped memory for tpu_custom_call.1']
    #allocation7 [shape = 'u8[262144]{0}', space=vmem, size = 0x40000, scoped, tag = 'input window, operand 2, single buffered']
    #allocation8 [shape = 'u8[8192]{0}', space=vmem, size = 0x2000, scoped, tag = 'output window, operand 0, single buffered']
    %8 = vsyncpa [#allocation3], 0
    %9 = vsyncpa [#allocation6], 0
    %10 = vsyncpa [#allocation4], 0
    // Predicated region
    $region2: #{tpu_custom_call.1} parent=1 // pred_check
      _
    $region3: #{tpu_custom_call.1} parent=1 // pred_check_branch
      %12 = sbr.rel (0) target = $region5
    $region4: #{tpu_custom_call.1} parent=1 // pred_region
      %s14 = ssub.s32 128, 128
      %15 = vsyncadd [#allocation3], %s14
      %s17 = sshll.u32 [#allocation2], 4
      %s18 = int_to_ptr.vmem [resolvable:$true] %s17
      %20 = dma.hbm_to_vmem [thread:$0]  %s0, 128, %s18, [#allocation3]
    $region5: #{tpu_custom_call.1} parent=1 // pred_fallthru
      _
    // Predicated region
    $region6: #{tpu_custom_call.1} parent=1 // pred_check
      _
    $region7: #{tpu_custom_call.1} parent=1 // pred_check_branch
      %22 = sbr.rel (0) target = $region9
    $region8: #{tpu_custom_call.1} parent=1 // pred_region
      %s24 = ssub.s32 512, 512
      %25 = vsyncadd [#allocation6], %s24
      %s27 = sshll.u32 [#allocation5], 4
      %s28 = int_to_ptr.vmem [resolvable:$true] %s27
      %30 = dma.hbm_to_vmem [thread:$0]  %s1, 512, %s28, [#allocation6]
    $region9: #{tpu_custom_call.1} parent=1 // pred_fallthru
      _
    // Predicated region
    $region10: #{tpu_custom_call.1} parent=1 // pred_check
      _
    $region11: #{tpu_custom_call.1} parent=1 // pred_check_branch
      %32 = sbr.rel (0) target = $region13
    $region12: #{tpu_custom_call.1} parent=1 // pred_region
      %s34 = ssub.s32 8192, 8192
      %35 = vsyncadd [#allocation6], %s34
      %s36 = sshll.u32 [#allocation7], 4
      %s37 = int_to_ptr.vmem [resolvable:$true] %s36
      %42 = dma.hbm_to_vmem [thread:$0]  %s2, 8192, %s37, [#allocation6], 128, 128, 8
    $region13: #{tpu_custom_call.1} parent=1 // pred_fallthru
      _
    // Predicated region
    $region14: #{tpu_custom_call.1} parent=1 // pred_check
      _
    $region15: #{tpu_custom_call.1} parent=1 // pred_check_branch
      %44 = sbr.rel (0) target = $region17
    $region16: #{tpu_custom_call.1} parent=1 // pred_region
      %45 = dma.done [#allocation3], 128
    $region17: #{tpu_custom_call.1} parent=1 // pred_fallthru
      _
    // Predicated region
    $region18: #{tpu_custom_call.1} parent=1 // pred_check
      _
    $region19: #{tpu_custom_call.1} parent=1 // pred_check_branch
      %47 = sbr.rel (0) target = $region21
    $region20: #{tpu_custom_call.1} parent=1 // pred_region
      %48 = dma.done [#allocation6], 512
    $region21: #{tpu_custom_call.1} parent=1 // pred_fallthru
      _
    // Predicated region
    $region22: #{tpu_custom_call.1} parent=1 // pred_check
      _
    $region23: #{tpu_custom_call.1} parent=1 // pred_check_branch
      %50 = sbr.rel (0) target = $region25
    $region24: #{tpu_custom_call.1} parent=1 // pred_region
      %51 = dma.done [#allocation6], 8192
    $region25: #{tpu_custom_call.1} parent=1 // pred_fallthru
      _
    %v52 = vld [vmem:[#allocation2] sm:$0xff]
    %v53 = vld [vmem:[#allocation5] sm:$0xff]
    %v54 = vld [vmem:[#allocation5 + $0x8] sm:$0xff]
    %v55 = vld [vmem:[#allocation5 + $0x10] sm:$0xff]
    %v56 = vld [vmem:[#allocation5 + $0x18] sm:$0xff]
    %v57 = vmul.f32 %v53, %v53
    %v58 = vmul.f32 %v54, %v54
    %v59 = vmul.f32 %v55, %v55
    %v60 = vmul.f32 %v56, %v56
    %v61 = vrot.slane %v57, 4
    %v62 = vadd.f32 %v57, %v61
    %v63 = vrot.slane %v62, 2
    %v64 = vadd.f32 %v62, %v63
    %v65 = vrot.slane %v64, 1
    %v66 = vadd.f32 %v64, %v65
    %v67 = vrot.slane %v58, 4
    %v68 = vadd.f32 %v58, %v67
    %v69 = vrot.slane %v68, 2
    %v70 = vadd.f32 %v68, %v69
    %v71 = vrot.slane %v70, 1
    %v72 = vadd.f32 %v70, %v71
    %v73 = vrot.slane %v59, 4
    %v74 = vadd.f32 %v59, %v73
    %v75 = vrot.slane %v74, 2
    %v76 = vadd.f32 %v74, %v75
    %v77 = vrot.slane %v76, 1
    %v78 = vadd.f32 %v76, %v77
    %v79 = vrot.slane %v60, 4
    %v80 = vadd.f32 %v60, %v79
    %v81 = vrot.slane %v80, 2
    %v82 = vadd.f32 %v80, %v81
    %v83 = vrot.slane %v82, 1
    %v84 = vadd.f32 %v82, %v83
    %v85 = vmax.f32 %v66, 1e-24
    %v86 = vmax.f32 %v72, 1e-24
    %v87 = vmax.f32 %v78, 1e-24
    %v88 = vmax.f32 %v84, 1e-24
    %v89 = vrsqrt.pop %v85
    %v90 = vrsqrt.pop %v86
    %v91 = vrsqrt.pop %v87
    %v92 = vrsqrt.pop %v88
    %v93 = vmul.f32 %v53, %v89
    %v94 = vmul.f32 %v54, %v90
    %v95 = vmul.f32 %v55, %v91
    %v96 = vmul.f32 %v56, %v92
    %v99 = vunpack.c.l.s4 1966171168
    %v100 = vunpack.c.0.s8 %v99
    %v101 = vlaneseq
    %v102 = vshrl.u32 %v101, 7
    %v103 = vsub.s32 %v100, %v102
    %v104 = vrot.slane %v52, %v103
    %v105 = vcombine.high %v104, %v104
    %v106 = vlaneseq
    %v107 = vshrl.u32 %v106, 7
    %v108 = vsub.s32 0, %v107
    %v109 = vrot.slane %v104, %v108
    %v110 = vlaneseq
    %v111 = vshrl.u32 %v110, 7
    %v112 = vsub.s32 1, %v111
    %v113 = vrot.slane %v104, %v112
    %v114 = vlaneseq
    %v115 = vshrl.u32 %v114, 7
    %v116 = vsub.s32 2, %v115
    %v117 = vrot.slane %v104, %v116
    %v118 = vlaneseq
    %v119 = vshrl.u32 %v118, 7
    %v120 = vsub.s32 3, %v119
    %v121 = vrot.slane %v104, %v120
    %v122 = vlaneseq
    %v123 = vshrl.u32 %v122, 7
    %v124 = vsub.s32 0, %v123
    %v125 = vrot.slane %v105, %v124
    %v126 = vlaneseq
    %v127 = vshrl.u32 %v126, 7
    %v128 = vsub.s32 1, %v127
    %v129 = vrot.slane %v105, %v128
    %v130 = vlaneseq
    %v131 = vshrl.u32 %v130, 7
    %v132 = vsub.s32 2, %v131
    %v133 = vrot.slane %v105, %v132
    %v134 = vlaneseq
    %v135 = vshrl.u32 %v134, 7
    %v136 = vsub.s32 3, %v135
    %v137 = vrot.slane %v105, %v136
    %v146 = vsub.f32 %v109, %v93
    %v147 = vsub.f32 %v113, %v94
    %v148 = vsub.f32 %v117, %v95
    %v149 = vsub.f32 %v121, %v96
    %v150 = vsub.f32 %v125, %v93
    %v151 = vsub.f32 %v129, %v94
    %v152 = vsub.f32 %v133, %v95
    %v153 = vsub.f32 %v137, %v96
    %v154 = vmul.f32 %v146, %v146
    %v155 = vmul.f32 %v147, %v147
    %v156 = vmul.f32 %v148, %v148
    %v157 = vmul.f32 %v149, %v149
    %v158 = vmul.f32 %v150, %v150
    %v159 = vmul.f32 %v151, %v151
    %v160 = vmul.f32 %v152, %v152
    %v161 = vmul.f32 %v153, %v153
    %v162 = vld [vmem:[#allocation7] sm:$0xff]
    %v163 = vld [vmem:[#allocation7 + $0x8] sm:$0xff]
    %v164 = vld [vmem:[#allocation7 + $0x10] sm:$0xff]
    %v165 = vld [vmem:[#allocation7 + $0x18] sm:$0xff]
    %v166 = vld [vmem:[#allocation7 + $0x20] sm:$0xff]
    %v167 = vld [vmem:[#allocation7 + $0x28] sm:$0xff]
    %v168 = vld [vmem:[#allocation7 + $0x30] sm:$0xff]
    %v169 = vld [vmem:[#allocation7 + $0x38] sm:$0xff]
    %v170 = vld [vmem:[#allocation7 + $0x40] sm:$0xff]
    %v171 = vld [vmem:[#allocation7 + $0x48] sm:$0xff]
    %v172 = vld [vmem:[#allocation7 + $0x50] sm:$0xff]
    %v173 = vld [vmem:[#allocation7 + $0x58] sm:$0xff]
    %v174 = vld [vmem:[#allocation7 + $0x60] sm:$0xff]
    %v175 = vld [vmem:[#allocation7 + $0x68] sm:$0xff]
    %v176 = vld [vmem:[#allocation7 + $0x70] sm:$0xff]
    %v177 = vld [vmem:[#allocation7 + $0x78] sm:$0xff]
    %v178 = vld [vmem:[#allocation7 + $0x80] sm:$0xff]
    %v179 = vld [vmem:[#allocation7 + $0x88] sm:$0xff]
    %v180 = vld [vmem:[#allocation7 + $0x90] sm:$0xff]
    %v181 = vld [vmem:[#allocation7 + $0x98] sm:$0xff]
    %v182 = vld [vmem:[#allocation7 + $0xa0] sm:$0xff]
    %v183 = vld [vmem:[#allocation7 + $0xa8] sm:$0xff]
    %v184 = vld [vmem:[#allocation7 + $0xb0] sm:$0xff]
    %v185 = vld [vmem:[#allocation7 + $0xb8] sm:$0xff]
    %v186 = vld [vmem:[#allocation7 + $0xc0] sm:$0xff]
    %v187 = vld [vmem:[#allocation7 + $0xc8] sm:$0xff]
    %v188 = vld [vmem:[#allocation7 + $0xd0] sm:$0xff]
    %v189 = vld [vmem:[#allocation7 + $0xd8] sm:$0xff]
    %v190 = vld [vmem:[#allocation7 + $0xe0] sm:$0xff]
    %v191 = vld [vmem:[#allocation7 + $0xe8] sm:$0xff]
    %v192 = vld [vmem:[#allocation7 + $0xf0] sm:$0xff]
    %v193 = vld [vmem:[#allocation7 + $0xf8] sm:$0xff]
    %v194 = vld [vmem:[#allocation7 + $0x100] sm:$0xff]
    %v195 = vld [vmem:[#allocation7 + $0x108] sm:$0xff]
    %v196 = vld [vmem:[#allocation7 + $0x110] sm:$0xff]
    %v197 = vld [vmem:[#allocation7 + $0x118] sm:$0xff]
    %v198 = vld [vmem:[#allocation7 + $0x120] sm:$0xff]
    %v199 = vld [vmem:[#allocation7 + $0x128] sm:$0xff]
    %v200 = vld [vmem:[#allocation7 + $0x130] sm:$0xff]
    %v201 = vld [vmem:[#allocation7 + $0x138] sm:$0xff]
    %v202 = vld [vmem:[#allocation7 + $0x140] sm:$0xff]
    %v203 = vld [vmem:[#allocation7 + $0x148] sm:$0xff]
    %v204 = vld [vmem:[#allocation7 + $0x150] sm:$0xff]
    %v205 = vld [vmem:[#allocation7 + $0x158] sm:$0xff]
    %v206 = vld [vmem:[#allocation7 + $0x160] sm:$0xff]
    %v207 = vld [vmem:[#allocation7 + $0x168] sm:$0xff]
    %v208 = vld [vmem:[#allocation7 + $0x170] sm:$0xff]
    %v209 = vld [vmem:[#allocation7 + $0x178] sm:$0xff]
    %v210 = vld [vmem:[#allocation7 + $0x180] sm:$0xff]
    %v211 = vld [vmem:[#allocation7 + $0x188] sm:$0xff]
    %v212 = vld [vmem:[#allocation7 + $0x190] sm:$0xff]
    %v213 = vld [vmem:[#allocation7 + $0x198] sm:$0xff]
    %v214 = vld [vmem:[#allocation7 + $0x1a0] sm:$0xff]
    %v215 = vld [vmem:[#allocation7 + $0x1a8] sm:$0xff]
    %v216 = vld [vmem:[#allocation7 + $0x1b0] sm:$0xff]
    %v217 = vld [vmem:[#allocation7 + $0x1b8] sm:$0xff]
    %v218 = vld [vmem:[#allocation7 + $0x1c0] sm:$0xff]
    %v219 = vld [vmem:[#allocation7 + $0x1c8] sm:$0xff]
    %v220 = vld [vmem:[#allocation7 + $0x1d0] sm:$0xff]
    %v221 = vld [vmem:[#allocation7 + $0x1d8] sm:$0xff]
    %v222 = vld [vmem:[#allocation7 + $0x1e0] sm:$0xff]
    %v223 = vld [vmem:[#allocation7 + $0x1e8] sm:$0xff]
    %v224 = vld [vmem:[#allocation7 + $0x1f0] sm:$0xff]
    %v225 = vld [vmem:[#allocation7 + $0x1f8] sm:$0xff]
    %226 = vmatprep.subr.mxu0 0.0
    %v227 = vand.u32 %v162, 4294901760
    %228 = vmatpush1.msra.mxu0 %v227
    %229 = vmatprep.subr.mxu0 0.0
    %v230 = vand.u32 %v163, 4294901760
    %231 = vmatpush1.msra.mxu0 %v230
    %232 = vmatprep.subr.mxu0 0.0
    %v233 = vand.u32 %v164, 4294901760
    %234 = vmatpush1.msra.mxu0 %v233
    %235 = vmatprep.subr.mxu0 0.0
    %v236 = vand.u32 %v165, 4294901760
    %237 = vmatpush1.msra.mxu0 %v236
    %238 = vmatprep.subr.mxu0 0.0
    %v239 = vand.u32 %v166, 4294901760
    %240 = vmatpush1.msra.mxu0 %v239
    %241 = vmatprep.subr.mxu0 0.0
    %v242 = vand.u32 %v167, 4294901760
    %243 = vmatpush1.msra.mxu0 %v242
    %244 = vmatprep.subr.mxu0 0.0
    %v245 = vand.u32 %v168, 4294901760
    %246 = vmatpush1.msra.mxu0 %v245
    %247 = vmatprep.subr.mxu0 0.0
    %v248 = vand.u32 %v169, 4294901760
    %249 = vmatpush1.msra.mxu0 %v248
    %250 = vmatprep.subr.mxu0 0.0
    %v251 = vand.u32 %v170, 4294901760
    %252 = vmatpush1.msra.mxu0 %v251
    %253 = vmatprep.subr.mxu0 0.0
    %v254 = vand.u32 %v171, 4294901760
    %255 = vmatpush1.msra.mxu0 %v254
    %256 = vmatprep.subr.mxu0 0.0
    %v257 = vand.u32 %v172, 4294901760
    %258 = vmatpush1.msra.mxu0 %v257
    %259 = vmatprep.subr.mxu0 0.0
    %v260 = vand.u32 %v173, 4294901760
    %261 = vmatpush1.msra.mxu0 %v260
    %262 = vmatprep.subr.mxu0 0.0
    %v263 = vand.u32 %v174, 4294901760
    %264 = vmatpush1.msra.mxu0 %v263
    %265 = vmatprep.subr.mxu0 0.0
    %v266 = vand.u32 %v175, 4294901760
    %267 = vmatpush1.msra.mxu0 %v266
    %268 = vmatprep.subr.mxu0 0.0
    %v269 = vand.u32 %v176, 4294901760
    %270 = vmatpush1.msra.mxu0 %v269
    %271 = vmatprep.subr.mxu0 0.0
    %v272 = vand.u32 %v177, 4294901760
    %273 = vmatpush1.msra.mxu0 %v272
    %274 = vmatprep.subr.mxu0 0.0
    %v275 = vand.u32 %v178, 4294901760
    %276 = vmatpush1.msra.mxu0 %v275
    %277 = vmatprep.subr.mxu0 0.0
    %v278 = vand.u32 %v179, 4294901760
    %279 = vmatpush1.msra.mxu0 %v278
    %280 = vmatprep.subr.mxu0 0.0
    %v281 = vand.u32 %v180, 4294901760
    %282 = vmatpush1.msra.mxu0 %v281
    %283 = vmatprep.subr.mxu0 0.0
    %v284 = vand.u32 %v181, 4294901760
    %285 = vmatpush1.msra.mxu0 %v284
    %286 = vmatprep.subr.mxu0 0.0
    %v287 = vand.u32 %v182, 4294901760
    %288 = vmatpush1.msra.mxu0 %v287
    %289 = vmatprep.subr.mxu0 0.0
    %v290 = vand.u32 %v183, 4294901760
    %291 = vmatpush1.msra.mxu0 %v290
    %292 = vmatprep.subr.mxu0 0.0
    %v293 = vand.u32 %v184, 4294901760
    %294 = vmatpush1.msra.mxu0 %v293
    %295 = vmatprep.subr.mxu0 0.0
    %v296 = vand.u32 %v185, 4294901760
    %297 = vmatpush1.msra.mxu0 %v296
    %298 = vmatprep.subr.mxu0 0.0
    %v299 = vand.u32 %v186, 4294901760
    %300 = vmatpush1.msra.mxu0 %v299
    %301 = vmatprep.subr.mxu0 0.0
    %v302 = vand.u32 %v187, 4294901760
    %303 = vmatpush1.msra.mxu0 %v302
    %304 = vmatprep.subr.mxu0 0.0
    %v305 = vand.u32 %v188, 4294901760
    %306 = vmatpush1.msra.mxu0 %v305
    %307 = vmatprep.subr.mxu0 0.0
    %v308 = vand.u32 %v189, 4294901760
    %309 = vmatpush1.msra.mxu0 %v308
    %310 = vmatprep.subr.mxu0 0.0
    %v311 = vand.u32 %v190, 4294901760
    %312 = vmatpush1.msra.mxu0 %v311
    %313 = vmatprep.subr.mxu0 0.0
    %v314 = vand.u32 %v191, 4294901760
    %315 = vmatpush1.msra.mxu0 %v314
    %316 = vmatprep.subr.mxu0 0.0
    %v317 = vand.u32 %v192, 4294901760
    %318 = vmatpush1.msra.mxu0 %v317
    %319 = vmatprep.subr.mxu0 0.0
    %v320 = vand.u32 %v193, 4294901760
    %321 = vmatpush1.msra.mxu0 %v320
    %v322 = vand.u32 %v155, 4294901760
    %v323 = vsub.f32 %v155, %v322
    %v324 = vand.u32 %v323, 4294901760
    %v325 = vsub.f32 %v323, %v324
    %v326 = vand.u32 %v325, 4294901760
    %327 = vmatprep.mubr.f32.mxu0 %v326
    %v328 = vand.u32 %v154, 4294901760
    %v329 = vsub.f32 %v154, %v328
    %v330 = vand.u32 %v329, 4294901760
    %v331 = vsub.f32 %v329, %v330
    %v332 = vand.u32 %v331, 4294901760
    %333 = vmatmul.mubr.f32.gmra.mrb[0].mxu0 %v332
    %v334 = vpop.f32.mrb[0].mxu0
    %v335 = vadd.f32 0.0, %v334
    %v336 = vpop.f32.mrb[0].mxu0
    %v337 = vand.u32 %v159, 4294901760
    %v338 = vsub.f32 %v159, %v337
    %v339 = vand.u32 %v338, 4294901760
    %v340 = vsub.f32 %v338, %v339
    %v341 = vand.u32 %v340, 4294901760
    %342 = vmatprep.mubr.f32.mxu0 %v341
    %v343 = vand.u32 %v158, 4294901760
    %v344 = vsub.f32 %v158, %v343
    %v345 = vand.u32 %v344, 4294901760
    %v346 = vsub.f32 %v344, %v345
    %v347 = vand.u32 %v346, 4294901760
    %348 = vmatmul.mubr.f32.gmra.mrb[0].mxu0 %v347
    %v349 = vpop.f32.mrb[0].mxu0
    %v350 = vadd.f32 0.0, %v349
    %v351 = vpop.f32.mrb[0].mxu0
    %352 = vdwg.mxu0
    %353 = vmatprep.subr.mxu0 0.0
    %v354 = vand.u32 %v162, 4294901760
    %v355 = vsub.f32 %v162, %v354
    %v356 = vand.u32 %v355, 4294901760
    %v357 = vsub.f32 %v355, %v356
    %v358 = vand.u32 %v357, 4294901760
    %359 = vmatpush1.msra.mxu0 %v358
    %360 = vmatprep.subr.mxu0 0.0
    %v361 = vand.u32 %v163, 4294901760
    %v362 = vsub.f32 %v163, %v361
    %v363 = vand.u32 %v362, 4294901760
    %v364 = vsub.f32 %v362, %v363
    %v365 = vand.u32 %v364, 4294901760
    %366 = vmatpush1.msra.mxu0 %v365
    %367 = vmatprep.subr.mxu0 0.0
    %v368 = vand.u32 %v164, 4294901760
    %v369 = vsub.f32 %v164, %v368
    %v370 = vand.u32 %v369, 4294901760
    %v371 = vsub.f32 %v369, %v370
    %v372 = vand.u32 %v371, 4294901760
    %373 = vmatpush1.msra.mxu0 %v372
    %374 = vmatprep.subr.mxu0 0.0
    %v375 = vand.u32 %v165, 4294901760
    %v376 = vsub.f32 %v165, %v375
    %v377 = vand.u32 %v376, 4294901760
    %v378 = vsub.f32 %v376, %v377
    %v379 = vand.u32 %v378, 4294901760
    %380 = vmatpush1.msra.mxu0 %v379
    %381 = vmatprep.subr.mxu0 0.0
    %v382 = vand.u32 %v166, 4294901760
    %v383 = vsub.f32 %v166, %v382
    %v384 = vand.u32 %v383, 4294901760
    %v385 = vsub.f32 %v383, %v384
    %v386 = vand.u32 %v385, 4294901760
    %387 = vmatpush1.msra.mxu0 %v386
    %388 = vmatprep.subr.mxu0 0.0
    %v389 = vand.u32 %v167, 4294901760
    %v390 = vsub.f32 %v167, %v389
    %v391 = vand.u32 %v390, 4294901760
    %v392 = vsub.f32 %v390, %v391
    %v393 = vand.u32 %v392, 4294901760
    %394 = vmatpush1.msra.mxu0 %v393
    %395 = vmatprep.subr.mxu0 0.0
    %v396 = vand.u32 %v168, 4294901760
    %v397 = vsub.f32 %v168, %v396
    %v398 = vand.u32 %v397, 4294901760
    %v399 = vsub.f32 %v397, %v398
    %v400 = vand.u32 %v399, 4294901760
    %401 = vmatpush1.msra.mxu0 %v400
    %402 = vmatprep.subr.mxu0 0.0
    %v403 = vand.u32 %v169, 4294901760
    %v404 = vsub.f32 %v169, %v403
    %v405 = vand.u32 %v404, 4294901760
    %v406 = vsub.f32 %v404, %v405
    %v407 = vand.u32 %v406, 4294901760
    %408 = vmatpush1.msra.mxu0 %v407
    %409 = vmatprep.subr.mxu0 0.0
    %v410 = vand.u32 %v170, 4294901760
    %v411 = vsub.f32 %v170, %v410
    %v412 = vand.u32 %v411, 4294901760
    %v413 = vsub.f32 %v411, %v412
    %v414 = vand.u32 %v413, 4294901760
    %415 = vmatpush1.msra.mxu0 %v414
    %416 = vmatprep.subr.mxu0 0.0
    %v417 = vand.u32 %v171, 4294901760
    %v418 = vsub.f32 %v171, %v417
    %v419 = vand.u32 %v418, 4294901760
    %v420 = vsub.f32 %v418, %v419
    %v421 = vand.u32 %v420, 4294901760
    %422 = vmatpush1.msra.mxu0 %v421
    %423 = vmatprep.subr.mxu0 0.0
    %v424 = vand.u32 %v172, 4294901760
    %v425 = vsub.f32 %v172, %v424
    %v426 = vand.u32 %v425, 4294901760
    %v427 = vsub.f32 %v425, %v426
    %v428 = vand.u32 %v427, 4294901760
    %429 = vmatpush1.msra.mxu0 %v428
    %430 = vmatprep.subr.mxu0 0.0
    %v431 = vand.u32 %v173, 4294901760
    %v432 = vsub.f32 %v173, %v431
    %v433 = vand.u32 %v432, 4294901760
    %v434 = vsub.f32 %v432, %v433
    %v435 = vand.u32 %v434, 4294901760
    %436 = vmatpush1.msra.mxu0 %v435
    %437 = vmatprep.subr.mxu0 0.0
    %v438 = vand.u32 %v174, 4294901760
    %v439 = vsub.f32 %v174, %v438
    %v440 = vand.u32 %v439, 4294901760
    %v441 = vsub.f32 %v439, %v440
    %v442 = vand.u32 %v441, 4294901760
    %443 = vmatpush1.msra.mxu0 %v442
    %444 = vmatprep.subr.mxu0 0.0
    %v445 = vand.u32 %v175, 4294901760
    %v446 = vsub.f32 %v175, %v445
    %v447 = vand.u32 %v446, 4294901760
    %v448 = vsub.f32 %v446, %v447
    %v449 = vand.u32 %v448, 4294901760
    %450 = vmatpush1.msra.mxu0 %v449
    %451 = vmatprep.subr.mxu0 0.0
    %v452 = vand.u32 %v176, 4294901760
    %v453 = vsub.f32 %v176, %v452
    %v454 = vand.u32 %v453, 4294901760
    %v455 = vsub.f32 %v453, %v454
    %v456 = vand.u32 %v455, 4294901760
    %457 = vmatpush1.msra.mxu0 %v456
    %458 = vmatprep.subr.mxu0 0.0
    %v459 = vand.u32 %v177, 4294901760
    %v460 = vsub.f32 %v177, %v459
    %v461 = vand.u32 %v460, 4294901760
    %v462 = vsub.f32 %v460, %v461
    %v463 = vand.u32 %v462, 4294901760
    %464 = vmatpush1.msra.mxu0 %v463
    %465 = vmatprep.subr.mxu0 0.0
    %v466 = vand.u32 %v178, 4294901760
    %v467 = vsub.f32 %v178, %v466
    %v468 = vand.u32 %v467, 4294901760
    %v469 = vsub.f32 %v467, %v468
    %v470 = vand.u32 %v469, 4294901760
    %471 = vmatpush1.msra.mxu0 %v470
    %472 = vmatprep.subr.mxu0 0.0
    %v473 = vand.u32 %v179, 4294901760
    %v474 = vsub.f32 %v179, %v473
    %v475 = vand.u32 %v474, 4294901760
    %v476 = vsub.f32 %v474, %v475
    %v477 = vand.u32 %v476, 4294901760
    %478 = vmatpush1.msra.mxu0 %v477
    %479 = vmatprep.subr.mxu0 0.0
    %v480 = vand.u32 %v180, 4294901760
    %v481 = vsub.f32 %v180, %v480
    %v482 = vand.u32 %v481, 4294901760
    %v483 = vsub.f32 %v481, %v482
    %v484 = vand.u32 %v483, 4294901760
    %485 = vmatpush1.msra.mxu0 %v484
    %486 = vmatprep.subr.mxu0 0.0
    %v487 = vand.u32 %v181, 4294901760
    %v488 = vsub.f32 %v181, %v487
    %v489 = vand.u32 %v488, 4294901760
    %v490 = vsub.f32 %v488, %v489
    %v491 = vand.u32 %v490, 4294901760
    %492 = vmatpush1.msra.mxu0 %v491
    %493 = vmatprep.subr.mxu0 0.0
    %v494 = vand.u32 %v182, 4294901760
    %v495 = vsub.f32 %v182, %v494
    %v496 = vand.u32 %v495, 4294901760
    %v497 = vsub.f32 %v495, %v496
    %v498 = vand.u32 %v497, 4294901760
    %499 = vmatpush1.msra.mxu0 %v498
    %500 = vmatprep.subr.mxu0 0.0
    %v501 = vand.u32 %v183, 4294901760
    %v502 = vsub.f32 %v183, %v501
    %v503 = vand.u32 %v502, 4294901760
    %v504 = vsub.f32 %v502, %v503
    %v505 = vand.u32 %v504, 4294901760
    %506 = vmatpush1.msra.mxu0 %v505
    %507 = vmatprep.subr.mxu0 0.0
    %v508 = vand.u32 %v184, 4294901760
    %v509 = vsub.f32 %v184, %v508
    %v510 = vand.u32 %v509, 4294901760
    %v511 = vsub.f32 %v509, %v510
    %v512 = vand.u32 %v511, 4294901760
    %513 = vmatpush1.msra.mxu0 %v512
    %514 = vmatprep.subr.mxu0 0.0
    %v515 = vand.u32 %v185, 4294901760
    %v516 = vsub.f32 %v185, %v515
    %v517 = vand.u32 %v516, 4294901760
    %v518 = vsub.f32 %v516, %v517
    %v519 = vand.u32 %v518, 4294901760
    %520 = vmatpush1.msra.mxu0 %v519
    %521 = vmatprep.subr.mxu0 0.0
    %v522 = vand.u32 %v186, 4294901760
    %v523 = vsub.f32 %v186, %v522
    %v524 = vand.u32 %v523, 4294901760
    %v525 = vsub.f32 %v523, %v524
    %v526 = vand.u32 %v525, 4294901760
    %527 = vmatpush1.msra.mxu0 %v526
    %528 = vmatprep.subr.mxu0 0.0
    %v529 = vand.u32 %v187, 4294901760
    %v530 = vsub.f32 %v187, %v529
    %v531 = vand.u32 %v530, 4294901760
    %v532 = vsub.f32 %v530, %v531
    %v533 = vand.u32 %v532, 4294901760
    %534 = vmatpush1.msra.mxu0 %v533
    %535 = vmatprep.subr.mxu0 0.0
    %v536 = vand.u32 %v188, 4294901760
    %v537 = vsub.f32 %v188, %v536
    %v538 = vand.u32 %v537, 4294901760
    %v539 = vsub.f32 %v537, %v538
    %v540 = vand.u32 %v539, 4294901760
    %541 = vmatpush1.msra.mxu0 %v540
    %542 = vmatprep.subr.mxu0 0.0
    %v543 = vand.u32 %v189, 4294901760
    %v544 = vsub.f32 %v189, %v543
    %v545 = vand.u32 %v544, 4294901760
    %v546 = vsub.f32 %v544, %v545
    %v547 = vand.u32 %v546, 4294901760
    %548 = vmatpush1.msra.mxu0 %v547
    %549 = vmatprep.subr.mxu0 0.0
    %v550 = vand.u32 %v190, 4294901760
    %v551 = vsub.f32 %v190, %v550
    %v552 = vand.u32 %v551, 4294901760
    %v553 = vsub.f32 %v551, %v552
    %v554 = vand.u32 %v553, 4294901760
    %555 = vmatpush1.msra.mxu0 %v554
    %556 = vmatprep.subr.mxu0 0.0
    %v557 = vand.u32 %v191, 4294901760
    %v558 = vsub.f32 %v191, %v557
    %v559 = vand.u32 %v558, 4294901760
    %v560 = vsub.f32 %v558, %v559
    %v561 = vand.u32 %v560, 4294901760
    %562 = vmatpush1.msra.mxu0 %v561
    %563 = vmatprep.subr.mxu0 0.0
    %v564 = vand.u32 %v192, 4294901760
    %v565 = vsub.f32 %v192, %v564
    %v566 = vand.u32 %v565, 4294901760
    %v567 = vsub.f32 %v565, %v566
    %v568 = vand.u32 %v567, 4294901760
    %569 = vmatpush1.msra.mxu0 %v568
    %570 = vmatprep.subr.mxu0 0.0
    %v571 = vand.u32 %v193, 4294901760
    %v572 = vsub.f32 %v193, %v571
    %v573 = vand.u32 %v572, 4294901760
    %v574 = vsub.f32 %v572, %v573
    %v575 = vand.u32 %v574, 4294901760
    %576 = vmatpush1.msra.mxu0 %v575
    %v577 = vand.u32 %v155, 4294901760
    %578 = vmatprep.mubr.f32.mxu0 %v577
    %v579 = vand.u32 %v154, 4294901760
    %580 = vmatmul.mubr.f32.gmra.mrb[0].mxu0 %v579
    %v581 = vpop.f32.mrb[0].mxu0
    %v582 = vadd.f32 %v335, %v581
    %v583 = vpop.f32.mrb[0].mxu0
    %v584 = vand.u32 %v159, 4294901760
    %585 = vmatprep.mubr.f32.mxu0 %v584
    %v586 = vand.u32 %v158, 4294901760
    %587 = vmatmul.mubr.f32.gmra.mrb[0].mxu0 %v586
    %v588 = vpop.f32.mrb[0].mxu0
    %v589 = vadd.f32 %v350, %v588
    %v590 = vpop.f32.mrb[0].mxu0
    %591 = vdwg.mxu0
    %592 = vmatprep.subr.mxu0 0.0
    %v593 = vand.u32 %v162, 4294901760
    %v594 = vsub.f32 %v162, %v593
    %595 = vmatpush1.msra.mxu0 %v594
    %596 = vmatprep.subr.mxu0 0.0
    %v597 = vand.u32 %v163, 4294901760
    %v598 = vsub.f32 %v163, %v597
    %599 = vmatpush1.msra.mxu0 %v598
    %600 = vmatprep.subr.mxu0 0.0
    %v601 = vand.u32 %v164, 4294901760
    %v602 = vsub.f32 %v164, %v601
    %603 = vmatpush1.msra.mxu0 %v602
    %604 = vmatprep.subr.mxu0 0.0
    %v605 = vand.u32 %v165, 4294901760
    %v606 = vsub.f32 %v165, %v605
    %607 = vmatpush1.msra.mxu0 %v606
    %608 = vmatprep.subr.mxu0 0.0
    %v609 = vand.u32 %v166, 4294901760
    %v610 = vsub.f32 %v166, %v609
    %611 = vmatpush1.msra.mxu0 %v610
    %612 = vmatprep.subr.mxu0 0.0
    %v613 = vand.u32 %v167, 4294901760
    %v614 = vsub.f32 %v167, %v613
    %615 = vmatpush1.msra.mxu0 %v614
    %616 = vmatprep.subr.mxu0 0.0
    %v617 = vand.u32 %v168, 4294901760
    %v618 = vsub.f32 %v168, %v617
    %619 = vmatpush1.msra.mxu0 %v618
    %620 = vmatprep.subr.mxu0 0.0
    %v621 = vand.u32 %v169, 4294901760
    %v622 = vsub.f32 %v169, %v621
    %623 = vmatpush1.msra.mxu0 %v622
    %624 = vmatprep.subr.mxu0 0.0
    %v625 = vand.u32 %v170, 4294901760
    %v626 = vsub.f32 %v170, %v625
    %627 = vmatpush1.msra.mxu0 %v626
    %628 = vmatprep.subr.mxu0 0.0
    %v629 = vand.u32 %v171, 4294901760
    %v630 = vsub.f32 %v171, %v629
    %631 = vmatpush1.msra.mxu0 %v630
    %632 = vmatprep.subr.mxu0 0.0
    %v633 = vand.u32 %v172, 4294901760
    %v634 = vsub.f32 %v172, %v633
    %635 = vmatpush1.msra.mxu0 %v634
    %636 = vmatprep.subr.mxu0 0.0
    %v637 = vand.u32 %v173, 4294901760
    %v638 = vsub.f32 %v173, %v637
    %639 = vmatpush1.msra.mxu0 %v638
    %640 = vmatprep.subr.mxu0 0.0
    %v641 = vand.u32 %v174, 4294901760
    %v642 = vsub.f32 %v174, %v641
    %643 = vmatpush1.msra.mxu0 %v642
    %644 = vmatprep.subr.mxu0 0.0
    %v645 = vand.u32 %v175, 4294901760
    %v646 = vsub.f32 %v175, %v645
    %647 = vmatpush1.msra.mxu0 %v646
    %648 = vmatprep.subr.mxu0 0.0
    %v649 = vand.u32 %v176, 4294901760
    %v650 = vsub.f32 %v176, %v649
    %651 = vmatpush1.msra.mxu0 %v650
    %652 = vmatprep.subr.mxu0 0.0
    %v653 = vand.u32 %v177, 4294901760
    %v654 = vsub.f32 %v177, %v653
    %655 = vmatpush1.msra.mxu0 %v654
    %656 = vmatprep.subr.mxu0 0.0
    %v657 = vand.u32 %v178, 4294901760
    %v658 = vsub.f32 %v178, %v657
    %659 = vmatpush1.msra.mxu0 %v658
    %660 = vmatprep.subr.mxu0 0.0
    %v661 = vand.u32 %v179, 4294901760
    %v662 = vsub.f32 %v179, %v661
    %663 = vmatpush1.msra.mxu0 %v662
    %664 = vmatprep.subr.mxu0 0.0
    %v665 = vand.u32 %v180, 4294901760
    %v666 = vsub.f32 %v180, %v665
    %667 = vmatpush1.msra.mxu0 %v666
    %668 = vmatprep.subr.mxu0 0.0
    %v669 = vand.u32 %v181, 4294901760
    %v670 = vsub.f32 %v181, %v669
    %671 = vmatpush1.msra.mxu0 %v670
    %672 = vmatprep.subr.mxu0 0.0
    %v673 = vand.u32 %v182, 4294901760
    %v674 = vsub.f32 %v182, %v673
    %675 = vmatpush1.msra.mxu0 %v674
    %676 = vmatprep.subr.mxu0 0.0
    %v677 = vand.u32 %v183, 4294901760
    %v678 = vsub.f32 %v183, %v677
    %679 = vmatpush1.msra.mxu0 %v678
    %680 = vmatprep.subr.mxu0 0.0
    %v681 = vand.u32 %v184, 4294901760
    %v682 = vsub.f32 %v184, %v681
    %683 = vmatpush1.msra.mxu0 %v682
    %684 = vmatprep.subr.mxu0 0.0
    %v685 = vand.u32 %v185, 4294901760
    %v686 = vsub.f32 %v185, %v685
    %687 = vmatpush1.msra.mxu0 %v686
    %688 = vmatprep.subr.mxu0 0.0
    %v689 = vand.u32 %v186, 4294901760
    %v690 = vsub.f32 %v186, %v689
    %691 = vmatpush1.msra.mxu0 %v690
    %692 = vmatprep.subr.mxu0 0.0
    %v693 = vand.u32 %v187, 4294901760
    %v694 = vsub.f32 %v187, %v693
    %695 = vmatpush1.msra.mxu0 %v694
    %696 = vmatprep.subr.mxu0 0.0
    %v697 = vand.u32 %v188, 4294901760
    %v698 = vsub.f32 %v188, %v697
    %699 = vmatpush1.msra.mxu0 %v698
    %700 = vmatprep.subr.mxu0 0.0
    %v701 = vand.u32 %v189, 4294901760
    %v702 = vsub.f32 %v189, %v701
    %703 = vmatpush1.msra.mxu0 %v702
    %704 = vmatprep.subr.mxu0 0.0
    %v705 = vand.u32 %v190, 4294901760
    %v706 = vsub.f32 %v190, %v705
    %707 = vmatpush1.msra.mxu0 %v706
    %708 = vmatprep.subr.mxu0 0.0
    %v709 = vand.u32 %v191, 4294901760
    %v710 = vsub.f32 %v191, %v709
    %711 = vmatpush1.msra.mxu0 %v710
    %712 = vmatprep.subr.mxu0 0.0
    %v713 = vand.u32 %v192, 4294901760
    %v714 = vsub.f32 %v192, %v713
    %715 = vmatpush1.msra.mxu0 %v714
    %716 = vmatprep.subr.mxu0 0.0
    %v717 = vand.u32 %v193, 4294901760
    %v718 = vsub.f32 %v193, %v717
    %719 = vmatpush1.msra.mxu0 %v718
    %v720 = vand.u32 %v155, 4294901760
    %v721 = vsub.f32 %v155, %v720
    %722 = vmatprep.mubr.f32.mxu0 %v721
    %v723 = vand.u32 %v154, 4294901760
    %v724 = vsub.f32 %v154, %v723
    %725 = vmatmul.mubr.f32.gmra.mrb[0].mxu0 %v724
    %v726 = vpop.f32.mrb[0].mxu0
    %v727 = vadd.f32 %v582, %v726
    %v728 = vpop.f32.mrb[0].mxu0
    %v729 = vand.u32 %v159, 4294901760
    %v730 = vsub.f32 %v159, %v729
    %731 = vmatprep.mubr.f32.mxu0 %v730
    %v732 = vand.u32 %v158, 4294901760
    %v733 = vsub.f32 %v158, %v732
    %734 = vmatmul.mubr.f32.gmra.mrb[0].mxu0 %v733
    %v735 = vpop.f32.mrb[0].mxu0
    %v736 = vadd.f32 %v589, %v735
    %v737 = vpop.f32.mrb[0].mxu0
    %738 = vdwg.mxu0
    %739 = vmatprep.subr.mxu0 0.0
    %v740 = vand.u32 %v162, 4294901760
    %741 = vmatpush1.msra.mxu0 %v740
    %742 = vmatprep.subr.mxu0 0.0
    %v743 = vand.u32 %v163, 4294901760
    %744 = vmatpush1.msra.mxu0 %v743
    %745 = vmatprep.subr.mxu0 0.0
    %v746 = vand.u32 %v164, 4294901760
    %747 = vmatpush1.msra.mxu0 %v746
    %748 = vmatprep.subr.mxu0 0.0
    %v749 = vand.u32 %v165, 4294901760
    %750 = vmatpush1.msra.mxu0 %v749
    %751 = vmatprep.subr.mxu0 0.0
    %v752 = vand.u32 %v166, 4294901760
    %753 = vmatpush1.msra.mxu0 %v752
    %754 = vmatprep.subr.mxu0 0.0
    %v755 = vand.u32 %v167, 4294901760
    %756 = vmatpush1.msra.mxu0 %v755
    %757 = vmatprep.subr.mxu0 0.0
    %v758 = vand.u32 %v168, 4294901760
    %759 = vmatpush1.msra.mxu0 %v758
    %760 = vmatprep.subr.mxu0 0.0
    %v761 = vand.u32 %v169, 4294901760
    %762 = vmatpush1.msra.mxu0 %v761
    %763 = vmatprep.subr.mxu0 0.0
    %v764 = vand.u32 %v170, 4294901760
    %765 = vmatpush1.msra.mxu0 %v764
    %766 = vmatprep.subr.mxu0 0.0
    %v767 = vand.u32 %v171, 4294901760
    %768 = vmatpush1.msra.mxu0 %v767
    %769 = vmatprep.subr.mxu0 0.0
    %v770 = vand.u32 %v172, 4294901760
    %771 = vmatpush1.msra.mxu0 %v770
    %772 = vmatprep.subr.mxu0 0.0
    %v773 = vand.u32 %v173, 4294901760
    %774 = vmatpush1.msra.mxu0 %v773
    %775 = vmatprep.subr.mxu0 0.0
    %v776 = vand.u32 %v174, 4294901760
    %777 = vmatpush1.msra.mxu0 %v776
    %778 = vmatprep.subr.mxu0 0.0
    %v779 = vand.u32 %v175, 4294901760
    %780 = vmatpush1.msra.mxu0 %v779
    %781 = vmatprep.subr.mxu0 0.0
    %v782 = vand.u32 %v176, 4294901760
    %783 = vmatpush1.msra.mxu0 %v782
    %784 = vmatprep.subr.mxu0 0.0
    %v785 = vand.u32 %v177, 4294901760
    %786 = vmatpush1.msra.mxu0 %v785
    %787 = vmatprep.subr.mxu0 0.0
    %v788 = vand.u32 %v178, 4294901760
    %789 = vmatpush1.msra.mxu0 %v788
    %790 = vmatprep.subr.mxu0 0.0
    %v791 = vand.u32 %v179, 4294901760
    %792 = vmatpush1.msra.mxu0 %v791
    %793 = vmatprep.subr.mxu0 0.0
    %v794 = vand.u32 %v180, 4294901760
    %795 = vmatpush1.msra.mxu0 %v794
    %796 = vmatprep.subr.mxu0 0.0
    %v797 = vand.u32 %v181, 4294901760
    %798 = vmatpush1.msra.mxu0 %v797
    %799 = vmatprep.subr.mxu0 0.0
    %v800 = vand.u32 %v182, 4294901760
    %801 = vmatpush1.msra.mxu0 %v800
    %802 = vmatprep.subr.mxu0 0.0
    %v803 = vand.u32 %v183, 4294901760
    %804 = vmatpush1.msra.mxu0 %v803
    %805 = vmatprep.subr.mxu0 0.0
    %v806 = vand.u32 %v184, 4294901760
    %807 = vmatpush1.msra.mxu0 %v806
    %808 = vmatprep.subr.mxu0 0.0
    %v809 = vand.u32 %v185, 4294901760
    %810 = vmatpush1.msra.mxu0 %v809
    %811 = vmatprep.subr.mxu0 0.0
    %v812 = vand.u32 %v186, 4294901760
    %813 = vmatpush1.msra.mxu0 %v812
    %814 = vmatprep.subr.mxu0 0.0
    %v815 = vand.u32 %v187, 4294901760
    %816 = vmatpush1.msra.mxu0 %v815
    %817 = vmatprep.subr.mxu0 0.0
    %v818 = vand.u32 %v188, 4294901760
    %819 = vmatpush1.msra.mxu0 %v818
    %820 = vmatprep.subr.mxu0 0.0
    %v821 = vand.u32 %v189, 4294901760
    %822 = vmatpush1.msra.mxu0 %v821
    %823 = vmatprep.subr.mxu0 0.0
    %v824 = vand.u32 %v190, 4294901760
    %825 = vmatpush1.msra.mxu0 %v824
    %826 = vmatprep.subr.mxu0 0.0
    %v827 = vand.u32 %v191, 4294901760
    %828 = vmatpush1.msra.mxu0 %v827
    %829 = vmatprep.subr.mxu0 0.0
    %v830 = vand.u32 %v192, 4294901760
    %831 = vmatpush1.msra.mxu0 %v830
    %832 = vmatprep.subr.mxu0 0.0
    %v833 = vand.u32 %v193, 4294901760
    %834 = vmatpush1.msra.mxu0 %v833
    %v835 = vand.u32 %v155, 4294901760
    %v836 = vsub.f32 %v155, %v835
    %v837 = vand.u32 %v836, 4294901760
    %838 = vmatprep.mubr.f32.mxu0 %v837
    %v839 = vand.u32 %v154, 4294901760
    %v840 = vsub.f32 %v154, %v839
    %v841 = vand.u32 %v840, 4294901760
    %842 = vmatmul.mubr.f32.gmra.mrb[0].mxu0 %v841
    %v843 = vpop.f32.mrb[0].mxu0
    %v844 = vadd.f32 %v727, %v843
    %v845 = vpop.f32.mrb[0].mxu0
    %v846 = vand.u32 %v159, 4294901760
    %v847 = vsub.f32 %v159, %v846
    %v848 = vand.u32 %v847, 4294901760
    %849 = vmatprep.mubr.f32.mxu0 %v848
    %v850 = vand.u32 %v158, 4294901760
    %v851 = vsub.f32 %v158, %v850
    %v852 = vand.u32 %v851, 4294901760
    %853 = vmatmul.mubr.f32.gmra.mrb[0].mxu0 %v852
    %v854 = vpop.f32.mrb[0].mxu0
    %v855 = vadd.f32 %v736, %v854
    %v856 = vpop.f32.mrb[0].mxu0
    %857 = vdwg.mxu0
    %858 = vmatprep.subr.mxu0 0.0
    %v859 = vand.u32 %v162, 4294901760
    %v860 = vsub.f32 %v162, %v859
    %v861 = vand.u32 %v860, 4294901760
    %862 = vmatpush1.msra.mxu0 %v861
    %863 = vmatprep.subr.mxu0 0.0
    %v864 = vand.u32 %v163, 4294901760
    %v865 = vsub.f32 %v163, %v864
    %v866 = vand.u32 %v865, 4294901760
    %867 = vmatpush1.msra.mxu0 %v866
    %868 = vmatprep.subr.mxu0 0.0
    %v869 = vand.u32 %v164, 4294901760
    %v870 = vsub.f32 %v164, %v869
    %v871 = vand.u32 %v870, 4294901760
    %872 = vmatpush1.msra.mxu0 %v871
    %873 = vmatprep.subr.mxu0 0.0
    %v874 = vand.u32 %v165, 4294901760
    %v875 = vsub.f32 %v165, %v874
    %v876 = vand.u32 %v875, 4294901760
    %877 = vmatpush1.msra.mxu0 %v876
    %878 = vmatprep.subr.mxu0 0.0
    %v879 = vand.u32 %v166, 4294901760
    %v880 = vsub.f32 %v166, %v879
    %v881 = vand.u32 %v880, 4294901760
    %882 = vmatpush1.msra.mxu0 %v881
    %883 = vmatprep.subr.mxu0 0.0
    %v884 = vand.u32 %v167, 4294901760
    %v885 = vsub.f32 %v167, %v884
    %v886 = vand.u32 %v885, 4294901760
    %887 = vmatpush1.msra.mxu0 %v886
    %888 = vmatprep.subr.mxu0 0.0
    %v889 = vand.u32 %v168, 4294901760
    %v890 = vsub.f32 %v168, %v889
    %v891 = vand.u32 %v890, 4294901760
    %892 = vmatpush1.msra.mxu0 %v891
    %893 = vmatprep.subr.mxu0 0.0
    %v894 = vand.u32 %v169, 4294901760
    %v895 = vsub.f32 %v169, %v894
    %v896 = vand.u32 %v895, 4294901760
    %897 = vmatpush1.msra.mxu0 %v896
    %898 = vmatprep.subr.mxu0 0.0
    %v899 = vand.u32 %v170, 4294901760
    %v900 = vsub.f32 %v170, %v899
    %v901 = vand.u32 %v900, 4294901760
    %902 = vmatpush1.msra.mxu0 %v901
    %903 = vmatprep.subr.mxu0 0.0
    %v904 = vand.u32 %v171, 4294901760
    %v905 = vsub.f32 %v171, %v904
    %v906 = vand.u32 %v905, 4294901760
    %907 = vmatpush1.msra.mxu0 %v906
    %908 = vmatprep.subr.mxu0 0.0
    %v909 = vand.u32 %v172, 4294901760
    %v910 = vsub.f32 %v172, %v909
    %v911 = vand.u32 %v910, 4294901760
    %912 = vmatpush1.msra.mxu0 %v911
    %913 = vmatprep.subr.mxu0 0.0
    %v914 = vand.u32 %v173, 4294901760
    %v915 = vsub.f32 %v173, %v914
    %v916 = vand.u32 %v915, 4294901760
    %917 = vmatpush1.msra.mxu0 %v916
    %918 = vmatprep.subr.mxu0 0.0
    %v919 = vand.u32 %v174, 4294901760
    %v920 = vsub.f32 %v174, %v919
    %v921 = vand.u32 %v920, 4294901760
    %922 = vmatpush1.msra.mxu0 %v921
    %923 = vmatprep.subr.mxu0 0.0
    %v924 = vand.u32 %v175, 4294901760
    %v925 = vsub.f32 %v175, %v924
    %v926 = vand.u32 %v925, 4294901760
    %927 = vmatpush1.msra.mxu0 %v926
    %928 = vmatprep.subr.mxu0 0.0
    %v929 = vand.u32 %v176, 4294901760
    %v930 = vsub.f32 %v176, %v929
    %v931 = vand.u32 %v930, 4294901760
    %932 = vmatpush1.msra.mxu0 %v931
    %933 = vmatprep.subr.mxu0 0.0
    %v934 = vand.u32 %v177, 4294901760
    %v935 = vsub.f32 %v177, %v934
    %v936 = vand.u32 %v935, 4294901760
    %937 = vmatpush1.msra.mxu0 %v936
    %938 = vmatprep.subr.mxu0 0.0
    %v939 = vand.u32 %v178, 4294901760
    %v940 = vsub.f32 %v178, %v939
    %v941 = vand.u32 %v940, 4294901760
    %942 = vmatpush1.msra.mxu0 %v941
    %943 = vmatprep.subr.mxu0 0.0
    %v944 = vand.u32 %v179, 4294901760
    %v945 = vsub.f32 %v179, %v944
    %v946 = vand.u32 %v945, 4294901760
    %947 = vmatpush1.msra.mxu0 %v946
    %948 = vmatprep.subr.mxu0 0.0
    %v949 = vand.u32 %v180, 4294901760
    %v950 = vsub.f32 %v180, %v949
    %v951 = vand.u32 %v950, 4294901760
    %952 = vmatpush1.msra.mxu0 %v951
    %953 = vmatprep.subr.mxu0 0.0
    %v954 = vand.u32 %v181, 4294901760
    %v955 = vsub.f32 %v181, %v954
    %v956 = vand.u32 %v955, 4294901760
    %957 = vmatpush1.msra.mxu0 %v956
    %958 = vmatprep.subr.mxu0 0.0
    %v959 = vand.u32 %v182, 4294901760
    %v960 = vsub.f32 %v182, %v959
    %v961 = vand.u32 %v960, 4294901760
    %962 = vmatpush1.msra.mxu0 %v961
    %963 = vmatprep.subr.mxu0 0.0
    %v964 = vand.u32 %v183, 4294901760
    %v965 = vsub.f32 %v183, %v964
    %v966 = vand.u32 %v965, 4294901760
    %967 = vmatpush1.msra.mxu0 %v966
    %968 = vmatprep.subr.mxu0 0.0
    %v969 = vand.u32 %v184, 4294901760
    %v970 = vsub.f32 %v184, %v969
    %v971 = vand.u32 %v970, 4294901760
    %972 = vmatpush1.msra.mxu0 %v971
    %973 = vmatprep.subr.mxu0 0.0
    %v974 = vand.u32 %v185, 4294901760
    %v975 = vsub.f32 %v185, %v974
    %v976 = vand.u32 %v975, 4294901760
    %977 = vmatpush1.msra.mxu0 %v976
    %978 = vmatprep.subr.mxu0 0.0
    %v979 = vand.u32 %v186, 4294901760
    %v980 = vsub.f32 %v186, %v979
    %v981 = vand.u32 %v980, 4294901760
    %982 = vmatpush1.msra.mxu0 %v981
    %983 = vmatprep.subr.mxu0 0.0
    %v984 = vand.u32 %v187, 4294901760
    %v985 = vsub.f32 %v187, %v984
    %v986 = vand.u32 %v985, 4294901760
    %987 = vmatpush1.msra.mxu0 %v986
    %988 = vmatprep.subr.mxu0 0.0
    %v989 = vand.u32 %v188, 4294901760
    %v990 = vsub.f32 %v188, %v989
    %v991 = vand.u32 %v990, 4294901760
    %992 = vmatpush1.msra.mxu0 %v991
    %993 = vmatprep.subr.mxu0 0.0
    %v994 = vand.u32 %v189, 4294901760
    %v995 = vsub.f32 %v189, %v994
    %v996 = vand.u32 %v995, 4294901760
    %997 = vmatpush1.msra.mxu0 %v996
    %998 = vmatprep.subr.mxu0 0.0
    %v999 = vand.u32 %v190, 4294901760
    %v1000 = vsub.f32 %v190, %v999
    %v1001 = vand.u32 %v1000, 4294901760
    %1002 = vmatpush1.msra.mxu0 %v1001
    %1003 = vmatprep.subr.mxu0 0.0
    %v1004 = vand.u32 %v191, 4294901760
    %v1005 = vsub.f32 %v191, %v1004
    %v1006 = vand.u32 %v1005, 4294901760
    %1007 = vmatpush1.msra.mxu0 %v1006
    %1008 = vmatprep.subr.mxu0 0.0
    %v1009 = vand.u32 %v192, 4294901760
    %v1010 = vsub.f32 %v192, %v1009
    %v1011 = vand.u32 %v1010, 4294901760
    %1012 = vmatpush1.msra.mxu0 %v1011
    %1013 = vmatprep.subr.mxu0 0.0
    %v1014 = vand.u32 %v193, 4294901760
    %v1015 = vsub.f32 %v193, %v1014
    %v1016 = vand.u32 %v1015, 4294901760
    %1017 = vmatpush1.msra.mxu0 %v1016
    %v1018 = vand.u32 %v155, 4294901760
    %1019 = vmatprep.mubr.f32.mxu0 %v1018
    %v1020 = vand.u32 %v154, 4294901760
    %1021 = vmatmul.mubr.f32.gmra.mrb[0].mxu0 %v1020
    %v1022 = vpop.f32.mrb[0].mxu0
    %v1023 = vadd.f32 %v844, %v1022
    %v1024 = vpop.f32.mrb[0].mxu0
    %v1025 = vand.u32 %v159, 4294901760
    %1026 = vmatprep.mubr.f32.mxu0 %v1025
    %v1027 = vand.u32 %v158, 4294901760
    %1028 = vmatmul.mubr.f32.gmra.mrb[0].mxu0 %v1027
    %v1029 = vpop.f32.mrb[0].mxu0
    %v1030 = vadd.f32 %v855, %v1029
    %v1031 = vpop.f32.mrb[0].mxu0
    %1032 = vdwg.mxu0
    %1033 = vmatprep.subr.mxu0 0.0
    %v1034 = vand.u32 %v162, 4294901760
    %1035 = vmatpush1.msra.mxu0 %v1034
    %1036 = vmatprep.subr.mxu0 0.0
    %v1037 = vand.u32 %v163, 4294901760
    %1038 = vmatpush1.msra.mxu0 %v1037
    %1039 = vmatprep.subr.mxu0 0.0
    %v1040 = vand.u32 %v164, 4294901760
    %1041 = vmatpush1.msra.mxu0 %v1040
    %1042 = vmatprep.subr.mxu0 0.0
    %v1043 = vand.u32 %v165, 4294901760
    %1044 = vmatpush1.msra.mxu0 %v1043
    %1045 = vmatprep.subr.mxu0 0.0
    %v1046 = vand.u32 %v166, 4294901760
    %1047 = vmatpush1.msra.mxu0 %v1046
    %1048 = vmatprep.subr.mxu0 0.0
    %v1049 = vand.u32 %v167, 4294901760
    %1050 = vmatpush1.msra.mxu0 %v1049
    %1051 = vmatprep.subr.mxu0 0.0
    %v1052 = vand.u32 %v168, 4294901760
    %1053 = vmatpush1.msra.mxu0 %v1052
    %1054 = vmatprep.subr.mxu0 0.0
    %v1055 = vand.u32 %v169, 4294901760
    %1056 = vmatpush1.msra.mxu0 %v1055
    %1057 = vmatprep.subr.mxu0 0.0
    %v1058 = vand.u32 %v170, 4294901760
    %1059 = vmatpush1.msra.mxu0 %v1058
    %1060 = vmatprep.subr.mxu0 0.0
    %v1061 = vand.u32 %v171, 4294901760
    %1062 = vmatpush1.msra.mxu0 %v1061
    %1063 = vmatprep.subr.mxu0 0.0
    %v1064 = vand.u32 %v172, 4294901760
    %1065 = vmatpush1.msra.mxu0 %v1064
    %1066 = vmatprep.subr.mxu0 0.0
    %v1067 = vand.u32 %v173, 4294901760
    %1068 = vmatpush1.msra.mxu0 %v1067
    %1069 = vmatprep.subr.mxu0 0.0
    %v1070 = vand.u32 %v174, 4294901760
    %1071 = vmatpush1.msra.mxu0 %v1070
    %1072 = vmatprep.subr.mxu0 0.0
    %v1073 = vand.u32 %v175, 4294901760
    %1074 = vmatpush1.msra.mxu0 %v1073
    %1075 = vmatprep.subr.mxu0 0.0
    %v1076 = vand.u32 %v176, 4294901760
    %1077 = vmatpush1.msra.mxu0 %v1076
    %1078 = vmatprep.subr.mxu0 0.0
    %v1079 = vand.u32 %v177, 4294901760
    %1080 = vmatpush1.msra.mxu0 %v1079
    %1081 = vmatprep.subr.mxu0 0.0
    %v1082 = vand.u32 %v178, 4294901760
    %1083 = vmatpush1.msra.mxu0 %v1082
    %1084 = vmatprep.subr.mxu0 0.0
    %v1085 = vand.u32 %v179, 4294901760
    %1086 = vmatpush1.msra.mxu0 %v1085
    %1087 = vmatprep.subr.mxu0 0.0
    %v1088 = vand.u32 %v180, 4294901760
    %1089 = vmatpush1.msra.mxu0 %v1088
    %1090 = vmatprep.subr.mxu0 0.0
    %v1091 = vand.u32 %v181, 4294901760
    %1092 = vmatpush1.msra.mxu0 %v1091
    %1093 = vmatprep.subr.mxu0 0.0
    %v1094 = vand.u32 %v182, 4294901760
    %1095 = vmatpush1.msra.mxu0 %v1094
    %1096 = vmatprep.subr.mxu0 0.0
    %v1097 = vand.u32 %v183, 4294901760
    %1098 = vmatpush1.msra.mxu0 %v1097
    %1099 = vmatprep.subr.mxu0 0.0
    %v1100 = vand.u32 %v184, 4294901760
    %1101 = vmatpush1.msra.mxu0 %v1100
    %1102 = vmatprep.subr.mxu0 0.0
    %v1103 = vand.u32 %v185, 4294901760
    %1104 = vmatpush1.msra.mxu0 %v1103
    %1105 = vmatprep.subr.mxu0 0.0
    %v1106 = vand.u32 %v186, 4294901760
    %1107 = vmatpush1.msra.mxu0 %v1106
    %1108 = vmatprep.subr.mxu0 0.0
    %v1109 = vand.u32 %v187, 4294901760
    %1110 = vmatpush1.msra.mxu0 %v1109
    %1111 = vmatprep.subr.mxu0 0.0
    %v1112 = vand.u32 %v188, 4294901760
    %1113 = vmatpush1.msra.mxu0 %v1112
    %1114 = vmatprep.subr.mxu0 0.0
    %v1115 = vand.u32 %v189, 4294901760
    %1116 = vmatpush1.msra.mxu0 %v1115
    %1117 = vmatprep.subr.mxu0 0.0
    %v1118 = vand.u32 %v190, 4294901760
    %1119 = vmatpush1.msra.mxu0 %v1118
    %1120 = vmatprep.subr.mxu0 0.0
    %v1121 = vand.u32 %v191, 4294901760
    %1122 = vmatpush1.msra.mxu0 %v1121
    %1123 = vmatprep.subr.mxu0 0.0
    %v1124 = vand.u32 %v192, 4294901760
    %1125 = vmatpush1.msra.mxu0 %v1124
    %1126 = vmatprep.subr.mxu0 0.0
    %v1127 = vand.u32 %v193, 4294901760
    %1128 = vmatpush1.msra.mxu0 %v1127
    %v1129 = vand.u32 %v155, 4294901760
    %1130 = vmatprep.mubr.f32.mxu0 %v1129
    %v1131 = vand.u32 %v154, 4294901760
    %1132 = vmatmul.mubr.f32.gmra.mrb[0].mxu0 %v1131
    %v1133 = vpop.f32.mrb[0].mxu0
    %v1134 = vadd.f32 %v1023, %v1133
    %v1135 = vpop.f32.mrb[0].mxu0
    %v1136 = vand.u32 %v159, 4294901760
    %1137 = vmatprep.mubr.f32.mxu0 %v1136
    %v1138 = vand.u32 %v158, 4294901760
    %1139 = vmatmul.mubr.f32.gmra.mrb[0].mxu0 %v1138
    %v1140 = vpop.f32.mrb[0].mxu0
    %v1141 = vadd.f32 %v1030, %v1140
    %v1142 = vpop.f32.mrb[0].mxu0
    %1143 = vdwg.mxu0
    %1144 = vmatprep.subr.mxu0 0.0
    %v1145 = vand.u32 %v194, 4294901760
    %1146 = vmatpush1.msra.mxu0 %v1145
    %1147 = vmatprep.subr.mxu0 0.0
    %v1148 = vand.u32 %v195, 4294901760
    %1149 = vmatpush1.msra.mxu0 %v1148
    %1150 = vmatprep.subr.mxu0 0.0
    %v1151 = vand.u32 %v196, 4294901760
    %1152 = vmatpush1.msra.mxu0 %v1151
    %1153 = vmatprep.subr.mxu0 0.0
    %v1154 = vand.u32 %v197, 4294901760
    %1155 = vmatpush1.msra.mxu0 %v1154
    %1156 = vmatprep.subr.mxu0 0.0
    %v1157 = vand.u32 %v198, 4294901760
    %1158 = vmatpush1.msra.mxu0 %v1157
    %1159 = vmatprep.subr.mxu0 0.0
    %v1160 = vand.u32 %v199, 4294901760
    %1161 = vmatpush1.msra.mxu0 %v1160
    %1162 = vmatprep.subr.mxu0 0.0
    %v1163 = vand.u32 %v200, 4294901760
    %1164 = vmatpush1.msra.mxu0 %v1163
    %1165 = vmatprep.subr.mxu0 0.0
    %v1166 = vand.u32 %v201, 4294901760
    %1167 = vmatpush1.msra.mxu0 %v1166
    %1168 = vmatprep.subr.mxu0 0.0
    %v1169 = vand.u32 %v202, 4294901760
    %1170 = vmatpush1.msra.mxu0 %v1169
    %1171 = vmatprep.subr.mxu0 0.0
    %v1172 = vand.u32 %v203, 4294901760
    %1173 = vmatpush1.msra.mxu0 %v1172
    %1174 = vmatprep.subr.mxu0 0.0
    %v1175 = vand.u32 %v204, 4294901760
    %1176 = vmatpush1.msra.mxu0 %v1175
    %1177 = vmatprep.subr.mxu0 0.0
    %v1178 = vand.u32 %v205, 4294901760
    %1179 = vmatpush1.msra.mxu0 %v1178
    %1180 = vmatprep.subr.mxu0 0.0
    %v1181 = vand.u32 %v206, 4294901760
    %1182 = vmatpush1.msra.mxu0 %v1181
    %1183 = vmatprep.subr.mxu0 0.0
    %v1184 = vand.u32 %v207, 4294901760
    %1185 = vmatpush1.msra.mxu0 %v1184
    %1186 = vmatprep.subr.mxu0 0.0
    %v1187 = vand.u32 %v208, 4294901760
    %1188 = vmatpush1.msra.mxu0 %v1187
    %1189 = vmatprep.subr.mxu0 0.0
    %v1190 = vand.u32 %v209, 4294901760
    %1191 = vmatpush1.msra.mxu0 %v1190
    %1192 = vmatprep.subr.mxu0 0.0
    %v1193 = vand.u32 %v210, 4294901760
    %1194 = vmatpush1.msra.mxu0 %v1193
    %1195 = vmatprep.subr.mxu0 0.0
    %v1196 = vand.u32 %v211, 4294901760
    %1197 = vmatpush1.msra.mxu0 %v1196
    %1198 = vmatprep.subr.mxu0 0.0
    %v1199 = vand.u32 %v212, 4294901760
    %1200 = vmatpush1.msra.mxu0 %v1199
    %1201 = vmatprep.subr.mxu0 0.0
    %v1202 = vand.u32 %v213, 4294901760
    %1203 = vmatpush1.msra.mxu0 %v1202
    %1204 = vmatprep.subr.mxu0 0.0
    %v1205 = vand.u32 %v214, 4294901760
    %1206 = vmatpush1.msra.mxu0 %v1205
    %1207 = vmatprep.subr.mxu0 0.0
    %v1208 = vand.u32 %v215, 4294901760
    %1209 = vmatpush1.msra.mxu0 %v1208
    %1210 = vmatprep.subr.mxu0 0.0
    %v1211 = vand.u32 %v216, 4294901760
    %1212 = vmatpush1.msra.mxu0 %v1211
    %1213 = vmatprep.subr.mxu0 0.0
    %v1214 = vand.u32 %v217, 4294901760
    %1215 = vmatpush1.msra.mxu0 %v1214
    %1216 = vmatprep.subr.mxu0 0.0
    %v1217 = vand.u32 %v218, 4294901760
    %1218 = vmatpush1.msra.mxu0 %v1217
    %1219 = vmatprep.subr.mxu0 0.0
    %v1220 = vand.u32 %v219, 4294901760
    %1221 = vmatpush1.msra.mxu0 %v1220
    %1222 = vmatprep.subr.mxu0 0.0
    %v1223 = vand.u32 %v220, 4294901760
    %1224 = vmatpush1.msra.mxu0 %v1223
    %1225 = vmatprep.subr.mxu0 0.0
    %v1226 = vand.u32 %v221, 4294901760
    %1227 = vmatpush1.msra.mxu0 %v1226
    %1228 = vmatprep.subr.mxu0 0.0
    %v1229 = vand.u32 %v222, 4294901760
    %1230 = vmatpush1.msra.mxu0 %v1229
    %1231 = vmatprep.subr.mxu0 0.0
    %v1232 = vand.u32 %v223, 4294901760
    %1233 = vmatpush1.msra.mxu0 %v1232
    %1234 = vmatprep.subr.mxu0 0.0
    %v1235 = vand.u32 %v224, 4294901760
    %1236 = vmatpush1.msra.mxu0 %v1235
    %1237 = vmatprep.subr.mxu0 0.0
    %v1238 = vand.u32 %v225, 4294901760
    %1239 = vmatpush1.msra.mxu0 %v1238
    %v1240 = vand.u32 %v157, 4294901760
    %v1241 = vsub.f32 %v157, %v1240
    %v1242 = vand.u32 %v1241, 4294901760
    %v1243 = vsub.f32 %v1241, %v1242
    %v1244 = vand.u32 %v1243, 4294901760
    %1245 = vmatprep.mubr.f32.mxu0 %v1244
    %v1246 = vand.u32 %v156, 4294901760
    %v1247 = vsub.f32 %v156, %v1246
    %v1248 = vand.u32 %v1247, 4294901760
    %v1249 = vsub.f32 %v1247, %v1248
    %v1250 = vand.u32 %v1249, 4294901760
    %1251 = vmatmul.mubr.f32.gmra.mrb[0].mxu0 %v1250
    %v1252 = vpop.f32.mrb[0].mxu0
    %v1253 = vadd.f32 %v1134, %v1252
    %v1254 = vpop.f32.mrb[0].mxu0
    %v1255 = vand.u32 %v161, 4294901760
    %v1256 = vsub.f32 %v161, %v1255
    %v1257 = vand.u32 %v1256, 4294901760
    %v1258 = vsub.f32 %v1256, %v1257
    %v1259 = vand.u32 %v1258, 4294901760
    %1260 = vmatprep.mubr.f32.mxu0 %v1259
    %v1261 = vand.u32 %v160, 4294901760
    %v1262 = vsub.f32 %v160, %v1261
    %v1263 = vand.u32 %v1262, 4294901760
    %v1264 = vsub.f32 %v1262, %v1263
    %v1265 = vand.u32 %v1264, 4294901760
    %1266 = vmatmul.mubr.f32.gmra.mrb[0].mxu0 %v1265
    %v1267 = vpop.f32.mrb[0].mxu0
    %v1268 = vadd.f32 %v1141, %v1267
    %v1269 = vpop.f32.mrb[0].mxu0
    %1270 = vdwg.mxu0
    %1271 = vmatprep.subr.mxu0 0.0
    %v1272 = vand.u32 %v194, 4294901760
    %v1273 = vsub.f32 %v194, %v1272
    %v1274 = vand.u32 %v1273, 4294901760
    %v1275 = vsub.f32 %v1273, %v1274
    %v1276 = vand.u32 %v1275, 4294901760
    %1277 = vmatpush1.msra.mxu0 %v1276
    %1278 = vmatprep.subr.mxu0 0.0
    %v1279 = vand.u32 %v195, 4294901760
    %v1280 = vsub.f32 %v195, %v1279
    %v1281 = vand.u32 %v1280, 4294901760
    %v1282 = vsub.f32 %v1280, %v1281
    %v1283 = vand.u32 %v1282, 4294901760
    %1284 = vmatpush1.msra.mxu0 %v1283
    %1285 = vmatprep.subr.mxu0 0.0
    %v1286 = vand.u32 %v196, 4294901760
    %v1287 = vsub.f32 %v196, %v1286
    %v1288 = vand.u32 %v1287, 4294901760
    %v1289 = vsub.f32 %v1287, %v1288
    %v1290 = vand.u32 %v1289, 4294901760
    %1291 = vmatpush1.msra.mxu0 %v1290
    %1292 = vmatprep.subr.mxu0 0.0
    %v1293 = vand.u32 %v197, 4294901760
    %v1294 = vsub.f32 %v197, %v1293
    %v1295 = vand.u32 %v1294, 4294901760
    %v1296 = vsub.f32 %v1294, %v1295
    %v1297 = vand.u32 %v1296, 4294901760
    %1298 = vmatpush1.msra.mxu0 %v1297
    %1299 = vmatprep.subr.mxu0 0.0
    %v1300 = vand.u32 %v198, 4294901760
    %v1301 = vsub.f32 %v198, %v1300
    %v1302 = vand.u32 %v1301, 4294901760
    %v1303 = vsub.f32 %v1301, %v1302
    %v1304 = vand.u32 %v1303, 4294901760
    %1305 = vmatpush1.msra.mxu0 %v1304
    %1306 = vmatprep.subr.mxu0 0.0
    %v1307 = vand.u32 %v199, 4294901760
    %v1308 = vsub.f32 %v199, %v1307
    %v1309 = vand.u32 %v1308, 4294901760
    %v1310 = vsub.f32 %v1308, %v1309
    %v1311 = vand.u32 %v1310, 4294901760
    %1312 = vmatpush1.msra.mxu0 %v1311
    %1313 = vmatprep.subr.mxu0 0.0
    %v1314 = vand.u32 %v200, 4294901760
    %v1315 = vsub.f32 %v200, %v1314
    %v1316 = vand.u32 %v1315, 4294901760
    %v1317 = vsub.f32 %v1315, %v1316
    %v1318 = vand.u32 %v1317, 4294901760
    %1319 = vmatpush1.msra.mxu0 %v1318
    %1320 = vmatprep.subr.mxu0 0.0
    %v1321 = vand.u32 %v201, 4294901760
    %v1322 = vsub.f32 %v201, %v1321
    %v1323 = vand.u32 %v1322, 4294901760
    %v1324 = vsub.f32 %v1322, %v1323
    %v1325 = vand.u32 %v1324, 4294901760
    %1326 = vmatpush1.msra.mxu0 %v1325
    %1327 = vmatprep.subr.mxu0 0.0
    %v1328 = vand.u32 %v202, 4294901760
    %v1329 = vsub.f32 %v202, %v1328
    %v1330 = vand.u32 %v1329, 4294901760
    %v1331 = vsub.f32 %v1329, %v1330
    %v1332 = vand.u32 %v1331, 4294901760
    %1333 = vmatpush1.msra.mxu0 %v1332
    %1334 = vmatprep.subr.mxu0 0.0
    %v1335 = vand.u32 %v203, 4294901760
    %v1336 = vsub.f32 %v203, %v1335
    %v1337 = vand.u32 %v1336, 4294901760
    %v1338 = vsub.f32 %v1336, %v1337
    %v1339 = vand.u32 %v1338, 4294901760
    %1340 = vmatpush1.msra.mxu0 %v1339
    %1341 = vmatprep.subr.mxu0 0.0
    %v1342 = vand.u32 %v204, 4294901760
    %v1343 = vsub.f32 %v204, %v1342
    %v1344 = vand.u32 %v1343, 4294901760
    %v1345 = vsub.f32 %v1343, %v1344
    %v1346 = vand.u32 %v1345, 4294901760
    %1347 = vmatpush1.msra.mxu0 %v1346
    %1348 = vmatprep.subr.mxu0 0.0
    %v1349 = vand.u32 %v205, 4294901760
    %v1350 = vsub.f32 %v205, %v1349
    %v1351 = vand.u32 %v1350, 4294901760
    %v1352 = vsub.f32 %v1350, %v1351
    %v1353 = vand.u32 %v1352, 4294901760
    %1354 = vmatpush1.msra.mxu0 %v1353
    %1355 = vmatprep.subr.mxu0 0.0
    %v1356 = vand.u32 %v206, 4294901760
    %v1357 = vsub.f32 %v206, %v1356
    %v1358 = vand.u32 %v1357, 4294901760
    %v1359 = vsub.f32 %v1357, %v1358
    %v1360 = vand.u32 %v1359, 4294901760
    %1361 = vmatpush1.msra.mxu0 %v1360
    %1362 = vmatprep.subr.mxu0 0.0
    %v1363 = vand.u32 %v207, 4294901760
    %v1364 = vsub.f32 %v207, %v1363
    %v1365 = vand.u32 %v1364, 4294901760
    %v1366 = vsub.f32 %v1364, %v1365
    %v1367 = vand.u32 %v1366, 4294901760
    %1368 = vmatpush1.msra.mxu0 %v1367
    %1369 = vmatprep.subr.mxu0 0.0
    %v1370 = vand.u32 %v208, 4294901760
    %v1371 = vsub.f32 %v208, %v1370
    %v1372 = vand.u32 %v1371, 4294901760
    %v1373 = vsub.f32 %v1371, %v1372
    %v1374 = vand.u32 %v1373, 4294901760
    %1375 = vmatpush1.msra.mxu0 %v1374
    %1376 = vmatprep.subr.mxu0 0.0
    %v1377 = vand.u32 %v209, 4294901760
    %v1378 = vsub.f32 %v209, %v1377
    %v1379 = vand.u32 %v1378, 4294901760
    %v1380 = vsub.f32 %v1378, %v1379
    %v1381 = vand.u32 %v1380, 4294901760
    %1382 = vmatpush1.msra.mxu0 %v1381
    %1383 = vmatprep.subr.mxu0 0.0
    %v1384 = vand.u32 %v210, 4294901760
    %v1385 = vsub.f32 %v210, %v1384
    %v1386 = vand.u32 %v1385, 4294901760
    %v1387 = vsub.f32 %v1385, %v1386
    %v1388 = vand.u32 %v1387, 4294901760
    %1389 = vmatpush1.msra.mxu0 %v1388
    %1390 = vmatprep.subr.mxu0 0.0
    %v1391 = vand.u32 %v211, 4294901760
    %v1392 = vsub.f32 %v211, %v1391
    %v1393 = vand.u32 %v1392, 4294901760
    %v1394 = vsub.f32 %v1392, %v1393
    %v1395 = vand.u32 %v1394, 4294901760
    %1396 = vmatpush1.msra.mxu0 %v1395
    %1397 = vmatprep.subr.mxu0 0.0
    %v1398 = vand.u32 %v212, 4294901760
    %v1399 = vsub.f32 %v212, %v1398
    %v1400 = vand.u32 %v1399, 4294901760
    %v1401 = vsub.f32 %v1399, %v1400
    %v1402 = vand.u32 %v1401, 4294901760
    %1403 = vmatpush1.msra.mxu0 %v1402
    %1404 = vmatprep.subr.mxu0 0.0
    %v1405 = vand.u32 %v213, 4294901760
    %v1406 = vsub.f32 %v213, %v1405
    %v1407 = vand.u32 %v1406, 4294901760
    %v1408 = vsub.f32 %v1406, %v1407
    %v1409 = vand.u32 %v1408, 4294901760
    %1410 = vmatpush1.msra.mxu0 %v1409
    %1411 = vmatprep.subr.mxu0 0.0
    %v1412 = vand.u32 %v214, 4294901760
    %v1413 = vsub.f32 %v214, %v1412
    %v1414 = vand.u32 %v1413, 4294901760
    %v1415 = vsub.f32 %v1413, %v1414
    %v1416 = vand.u32 %v1415, 4294901760
    %1417 = vmatpush1.msra.mxu0 %v1416
    %1418 = vmatprep.subr.mxu0 0.0
    %v1419 = vand.u32 %v215, 4294901760
    %v1420 = vsub.f32 %v215, %v1419
    %v1421 = vand.u32 %v1420, 4294901760
    %v1422 = vsub.f32 %v1420, %v1421
    %v1423 = vand.u32 %v1422, 4294901760
    %1424 = vmatpush1.msra.mxu0 %v1423
    %1425 = vmatprep.subr.mxu0 0.0
    %v1426 = vand.u32 %v216, 4294901760
    %v1427 = vsub.f32 %v216, %v1426
    %v1428 = vand.u32 %v1427, 4294901760
    %v1429 = vsub.f32 %v1427, %v1428
    %v1430 = vand.u32 %v1429, 4294901760
    %1431 = vmatpush1.msra.mxu0 %v1430
    %1432 = vmatprep.subr.mxu0 0.0
    %v1433 = vand.u32 %v217, 4294901760
    %v1434 = vsub.f32 %v217, %v1433
    %v1435 = vand.u32 %v1434, 4294901760
    %v1436 = vsub.f32 %v1434, %v1435
    %v1437 = vand.u32 %v1436, 4294901760
    %1438 = vmatpush1.msra.mxu0 %v1437
    %1439 = vmatprep.subr.mxu0 0.0
    %v1440 = vand.u32 %v218, 4294901760
    %v1441 = vsub.f32 %v218, %v1440
    %v1442 = vand.u32 %v1441, 4294901760
    %v1443 = vsub.f32 %v1441, %v1442
    %v1444 = vand.u32 %v1443, 4294901760
    %1445 = vmatpush1.msra.mxu0 %v1444
    %1446 = vmatprep.subr.mxu0 0.0
    %v1447 = vand.u32 %v219, 4294901760
    %v1448 = vsub.f32 %v219, %v1447
    %v1449 = vand.u32 %v1448, 4294901760
    %v1450 = vsub.f32 %v1448, %v1449
    %v1451 = vand.u32 %v1450, 4294901760
    %1452 = vmatpush1.msra.mxu0 %v1451
    %1453 = vmatprep.subr.mxu0 0.0
    %v1454 = vand.u32 %v220, 4294901760
    %v1455 = vsub.f32 %v220, %v1454
    %v1456 = vand.u32 %v1455, 4294901760
    %v1457 = vsub.f32 %v1455, %v1456
    %v1458 = vand.u32 %v1457, 4294901760
    %1459 = vmatpush1.msra.mxu0 %v1458
    %1460 = vmatprep.subr.mxu0 0.0
    %v1461 = vand.u32 %v221, 4294901760
    %v1462 = vsub.f32 %v221, %v1461
    %v1463 = vand.u32 %v1462, 4294901760
    %v1464 = vsub.f32 %v1462, %v1463
    %v1465 = vand.u32 %v1464, 4294901760
    %1466 = vmatpush1.msra.mxu0 %v1465
    %1467 = vmatprep.subr.mxu0 0.0
    %v1468 = vand.u32 %v222, 4294901760
    %v1469 = vsub.f32 %v222, %v1468
    %v1470 = vand.u32 %v1469, 4294901760
    %v1471 = vsub.f32 %v1469, %v1470
    %v1472 = vand.u32 %v1471, 4294901760
    %1473 = vmatpush1.msra.mxu0 %v1472
    %1474 = vmatprep.subr.mxu0 0.0
    %v1475 = vand.u32 %v223, 4294901760
    %v1476 = vsub.f32 %v223, %v1475
    %v1477 = vand.u32 %v1476, 4294901760
    %v1478 = vsub.f32 %v1476, %v1477
    %v1479 = vand.u32 %v1478, 4294901760
    %1480 = vmatpush1.msra.mxu0 %v1479
    %1481 = vmatprep.subr.mxu0 0.0
    %v1482 = vand.u32 %v224, 4294901760
    %v1483 = vsub.f32 %v224, %v1482
    %v1484 = vand.u32 %v1483, 4294901760
    %v1485 = vsub.f32 %v1483, %v1484
    %v1486 = vand.u32 %v1485, 4294901760
    %1487 = vmatpush1.msra.mxu0 %v1486
    %1488 = vmatprep.subr.mxu0 0.0
    %v1489 = vand.u32 %v225, 4294901760
    %v1490 = vsub.f32 %v225, %v1489
    %v1491 = vand.u32 %v1490, 4294901760
    %v1492 = vsub.f32 %v1490, %v1491
    %v1493 = vand.u32 %v1492, 4294901760
    %1494 = vmatpush1.msra.mxu0 %v1493
    %v1495 = vand.u32 %v157, 4294901760
    %1496 = vmatprep.mubr.f32.mxu0 %v1495
    %v1497 = vand.u32 %v156, 4294901760
    %1498 = vmatmul.mubr.f32.gmra.mrb[0].mxu0 %v1497
    %v1499 = vpop.f32.mrb[0].mxu0
    %v1500 = vadd.f32 %v1253, %v1499
    %v1501 = vpop.f32.mrb[0].mxu0
    %v1502 = vand.u32 %v161, 4294901760
    %1503 = vmatprep.mubr.f32.mxu0 %v1502
    %v1504 = vand.u32 %v160, 4294901760
    %1505 = vmatmul.mubr.f32.gmra.mrb[0].mxu0 %v1504
    %v1506 = vpop.f32.mrb[0].mxu0
    %v1507 = vadd.f32 %v1268, %v1506
    %v1508 = vpop.f32.mrb[0].mxu0
    %1509 = vdwg.mxu0
    %1510 = vmatprep.subr.mxu0 0.0
    %v1511 = vand.u32 %v194, 4294901760
    %v1512 = vsub.f32 %v194, %v1511
    %1513 = vmatpush1.msra.mxu0 %v1512
    %1514 = vmatprep.subr.mxu0 0.0
    %v1515 = vand.u32 %v195, 4294901760
    %v1516 = vsub.f32 %v195, %v1515
    %1517 = vmatpush1.msra.mxu0 %v1516
    %1518 = vmatprep.subr.mxu0 0.0
    %v1519 = vand.u32 %v196, 4294901760
    %v1520 = vsub.f32 %v196, %v1519
    %1521 = vmatpush1.msra.mxu0 %v1520
    %1522 = vmatprep.subr.mxu0 0.0
    %v1523 = vand.u32 %v197, 4294901760
    %v1524 = vsub.f32 %v197, %v1523
    %1525 = vmatpush1.msra.mxu0 %v1524
    %1526 = vmatprep.subr.mxu0 0.0
    %v1527 = vand.u32 %v198, 4294901760
    %v1528 = vsub.f32 %v198, %v1527
    %1529 = vmatpush1.msra.mxu0 %v1528
    %1530 = vmatprep.subr.mxu0 0.0
    %v1531 = vand.u32 %v199, 4294901760
    %v1532 = vsub.f32 %v199, %v1531
    %1533 = vmatpush1.msra.mxu0 %v1532
    %1534 = vmatprep.subr.mxu0 0.0
    %v1535 = vand.u32 %v200, 4294901760
    %v1536 = vsub.f32 %v200, %v1535
    %1537 = vmatpush1.msra.mxu0 %v1536
    %1538 = vmatprep.subr.mxu0 0.0
    %v1539 = vand.u32 %v201, 4294901760
    %v1540 = vsub.f32 %v201, %v1539
    %1541 = vmatpush1.msra.mxu0 %v1540
    %1542 = vmatprep.subr.mxu0 0.0
    %v1543 = vand.u32 %v202, 4294901760
    %v1544 = vsub.f32 %v202, %v1543
    %1545 = vmatpush1.msra.mxu0 %v1544
    %1546 = vmatprep.subr.mxu0 0.0
    %v1547 = vand.u32 %v203, 4294901760
    %v1548 = vsub.f32 %v203, %v1547
    %1549 = vmatpush1.msra.mxu0 %v1548
    %1550 = vmatprep.subr.mxu0 0.0
    %v1551 = vand.u32 %v204, 4294901760
    %v1552 = vsub.f32 %v204, %v1551
    %1553 = vmatpush1.msra.mxu0 %v1552
    %1554 = vmatprep.subr.mxu0 0.0
    %v1555 = vand.u32 %v205, 4294901760
    %v1556 = vsub.f32 %v205, %v1555
    %1557 = vmatpush1.msra.mxu0 %v1556
    %1558 = vmatprep.subr.mxu0 0.0
    %v1559 = vand.u32 %v206, 4294901760
    %v1560 = vsub.f32 %v206, %v1559
    %1561 = vmatpush1.msra.mxu0 %v1560
    %1562 = vmatprep.subr.mxu0 0.0
    %v1563 = vand.u32 %v207, 4294901760
    %v1564 = vsub.f32 %v207, %v1563
    %1565 = vmatpush1.msra.mxu0 %v1564
    %1566 = vmatprep.subr.mxu0 0.0
    %v1567 = vand.u32 %v208, 4294901760
    %v1568 = vsub.f32 %v208, %v1567
    %1569 = vmatpush1.msra.mxu0 %v1568
    %1570 = vmatprep.subr.mxu0 0.0
    %v1571 = vand.u32 %v209, 4294901760
    %v1572 = vsub.f32 %v209, %v1571
    %1573 = vmatpush1.msra.mxu0 %v1572
    %1574 = vmatprep.subr.mxu0 0.0
    %v1575 = vand.u32 %v210, 4294901760
    %v1576 = vsub.f32 %v210, %v1575
    %1577 = vmatpush1.msra.mxu0 %v1576
    %1578 = vmatprep.subr.mxu0 0.0
    %v1579 = vand.u32 %v211, 4294901760
    %v1580 = vsub.f32 %v211, %v1579
    %1581 = vmatpush1.msra.mxu0 %v1580
    %1582 = vmatprep.subr.mxu0 0.0
    %v1583 = vand.u32 %v212, 4294901760
    %v1584 = vsub.f32 %v212, %v1583
    %1585 = vmatpush1.msra.mxu0 %v1584
    %1586 = vmatprep.subr.mxu0 0.0
    %v1587 = vand.u32 %v213, 4294901760
    %v1588 = vsub.f32 %v213, %v1587
    %1589 = vmatpush1.msra.mxu0 %v1588
    %1590 = vmatprep.subr.mxu0 0.0
    %v1591 = vand.u32 %v214, 4294901760
    %v1592 = vsub.f32 %v214, %v1591
    %1593 = vmatpush1.msra.mxu0 %v1592
    %1594 = vmatprep.subr.mxu0 0.0
    %v1595 = vand.u32 %v215, 4294901760
    %v1596 = vsub.f32 %v215, %v1595
    %1597 = vmatpush1.msra.mxu0 %v1596
    %1598 = vmatprep.subr.mxu0 0.0
    %v1599 = vand.u32 %v216, 4294901760
    %v1600 = vsub.f32 %v216, %v1599
    %1601 = vmatpush1.msra.mxu0 %v1600
    %1602 = vmatprep.subr.mxu0 0.0
    %v1603 = vand.u32 %v217, 4294901760
    %v1604 = vsub.f32 %v217, %v1603
    %1605 = vmatpush1.msra.mxu0 %v1604
    %1606 = vmatprep.subr.mxu0 0.0
    %v1607 = vand.u32 %v218, 4294901760
    %v1608 = vsub.f32 %v218, %v1607
    %1609 = vmatpush1.msra.mxu0 %v1608
    %1610 = vmatprep.subr.mxu0 0.0
    %v1611 = vand.u32 %v219, 4294901760
    %v1612 = vsub.f32 %v219, %v1611
    %1613 = vmatpush1.msra.mxu0 %v1612
    %1614 = vmatprep.subr.mxu0 0.0
    %v1615 = vand.u32 %v220, 4294901760
    %v1616 = vsub.f32 %v220, %v1615
    %1617 = vmatpush1.msra.mxu0 %v1616
    %1618 = vmatprep.subr.mxu0 0.0
    %v1619 = vand.u32 %v221, 4294901760
    %v1620 = vsub.f32 %v221, %v1619
    %1621 = vmatpush1.msra.mxu0 %v1620
    %1622 = vmatprep.subr.mxu0 0.0
    %v1623 = vand.u32 %v222, 4294901760
    %v1624 = vsub.f32 %v222, %v1623
    %1625 = vmatpush1.msra.mxu0 %v1624
    %1626 = vmatprep.subr.mxu0 0.0
    %v1627 = vand.u32 %v223, 4294901760
    %v1628 = vsub.f32 %v223, %v1627
    %1629 = vmatpush1.msra.mxu0 %v1628
    %1630 = vmatprep.subr.mxu0 0.0
    %v1631 = vand.u32 %v224, 4294901760
    %v1632 = vsub.f32 %v224, %v1631
    %1633 = vmatpush1.msra.mxu0 %v1632
    %1634 = vmatprep.subr.mxu0 0.0
    %v1635 = vand.u32 %v225, 4294901760
    %v1636 = vsub.f32 %v225, %v1635
    %1637 = vmatpush1.msra.mxu0 %v1636
    %v1638 = vand.u32 %v157, 4294901760
    %v1639 = vsub.f32 %v157, %v1638
    %1640 = vmatprep.mubr.f32.mxu0 %v1639
    %v1641 = vand.u32 %v156, 4294901760
    %v1642 = vsub.f32 %v156, %v1641
    %1643 = vmatmul.mubr.f32.gmra.mrb[0].mxu0 %v1642
    %v1644 = vpop.f32.mrb[0].mxu0
    %v1645 = vadd.f32 %v1500, %v1644
    %v1646 = vpop.f32.mrb[0].mxu0
    %v1647 = vand.u32 %v161, 4294901760
    %v1648 = vsub.f32 %v161, %v1647
    %1649 = vmatprep.mubr.f32.mxu0 %v1648
    %v1650 = vand.u32 %v160, 4294901760
    %v1651 = vsub.f32 %v160, %v1650
    %1652 = vmatmul.mubr.f32.gmra.mrb[0].mxu0 %v1651
    %v1653 = vpop.f32.mrb[0].mxu0
    %v1654 = vadd.f32 %v1507, %v1653
    %v1655 = vpop.f32.mrb[0].mxu0
    %1656 = vdwg.mxu0
    %1657 = vmatprep.subr.mxu0 0.0
    %v1658 = vand.u32 %v194, 4294901760
    %1659 = vmatpush1.msra.mxu0 %v1658
    %1660 = vmatprep.subr.mxu0 0.0
    %v1661 = vand.u32 %v195, 4294901760
    %1662 = vmatpush1.msra.mxu0 %v1661
    %1663 = vmatprep.subr.mxu0 0.0
    %v1664 = vand.u32 %v196, 4294901760
    %1665 = vmatpush1.msra.mxu0 %v1664
    %1666 = vmatprep.subr.mxu0 0.0
    %v1667 = vand.u32 %v197, 4294901760
    %1668 = vmatpush1.msra.mxu0 %v1667
    %1669 = vmatprep.subr.mxu0 0.0
    %v1670 = vand.u32 %v198, 4294901760
    %1671 = vmatpush1.msra.mxu0 %v1670
    %1672 = vmatprep.subr.mxu0 0.0
    %v1673 = vand.u32 %v199, 4294901760
    %1674 = vmatpush1.msra.mxu0 %v1673
    %1675 = vmatprep.subr.mxu0 0.0
    %v1676 = vand.u32 %v200, 4294901760
    %1677 = vmatpush1.msra.mxu0 %v1676
    %1678 = vmatprep.subr.mxu0 0.0
    %v1679 = vand.u32 %v201, 4294901760
    %1680 = vmatpush1.msra.mxu0 %v1679
    %1681 = vmatprep.subr.mxu0 0.0
    %v1682 = vand.u32 %v202, 4294901760
    %1683 = vmatpush1.msra.mxu0 %v1682
    %1684 = vmatprep.subr.mxu0 0.0
    %v1685 = vand.u32 %v203, 4294901760
    %1686 = vmatpush1.msra.mxu0 %v1685
    %1687 = vmatprep.subr.mxu0 0.0
    %v1688 = vand.u32 %v204, 4294901760
    %1689 = vmatpush1.msra.mxu0 %v1688
    %1690 = vmatprep.subr.mxu0 0.0
    %v1691 = vand.u32 %v205, 4294901760
    %1692 = vmatpush1.msra.mxu0 %v1691
    %1693 = vmatprep.subr.mxu0 0.0
    %v1694 = vand.u32 %v206, 4294901760
    %1695 = vmatpush1.msra.mxu0 %v1694
    %1696 = vmatprep.subr.mxu0 0.0
    %v1697 = vand.u32 %v207, 4294901760
    %1698 = vmatpush1.msra.mxu0 %v1697
    %1699 = vmatprep.subr.mxu0 0.0
    %v1700 = vand.u32 %v208, 4294901760
    %1701 = vmatpush1.msra.mxu0 %v1700
    %1702 = vmatprep.subr.mxu0 0.0
    %v1703 = vand.u32 %v209, 4294901760
    %1704 = vmatpush1.msra.mxu0 %v1703
    %1705 = vmatprep.subr.mxu0 0.0
    %v1706 = vand.u32 %v210, 4294901760
    %1707 = vmatpush1.msra.mxu0 %v1706
    %1708 = vmatprep.subr.mxu0 0.0
    %v1709 = vand.u32 %v211, 4294901760
    %1710 = vmatpush1.msra.mxu0 %v1709
    %1711 = vmatprep.subr.mxu0 0.0
    %v1712 = vand.u32 %v212, 4294901760
    %1713 = vmatpush1.msra.mxu0 %v1712
    %1714 = vmatprep.subr.mxu0 0.0
    %v1715 = vand.u32 %v213, 4294901760
    %1716 = vmatpush1.msra.mxu0 %v1715
    %1717 = vmatprep.subr.mxu0 0.0
    %v1718 = vand.u32 %v214, 4294901760
    %1719 = vmatpush1.msra.mxu0 %v1718
    %1720 = vmatprep.subr.mxu0 0.0
    %v1721 = vand.u32 %v215, 4294901760
    %1722 = vmatpush1.msra.mxu0 %v1721
    %1723 = vmatprep.subr.mxu0 0.0
    %v1724 = vand.u32 %v216, 4294901760
    %1725 = vmatpush1.msra.mxu0 %v1724
    %1726 = vmatprep.subr.mxu0 0.0
    %v1727 = vand.u32 %v217, 4294901760
    %1728 = vmatpush1.msra.mxu0 %v1727
    %1729 = vmatprep.subr.mxu0 0.0
    %v1730 = vand.u32 %v218, 4294901760
    %1731 = vmatpush1.msra.mxu0 %v1730
    %1732 = vmatprep.subr.mxu0 0.0
    %v1733 = vand.u32 %v219, 4294901760
    %1734 = vmatpush1.msra.mxu0 %v1733
    %1735 = vmatprep.subr.mxu0 0.0
    %v1736 = vand.u32 %v220, 4294901760
    %1737 = vmatpush1.msra.mxu0 %v1736
    %1738 = vmatprep.subr.mxu0 0.0
    %v1739 = vand.u32 %v221, 4294901760
    %1740 = vmatpush1.msra.mxu0 %v1739
    %1741 = vmatprep.subr.mxu0 0.0
    %v1742 = vand.u32 %v222, 4294901760
    %1743 = vmatpush1.msra.mxu0 %v1742
    %1744 = vmatprep.subr.mxu0 0.0
    %v1745 = vand.u32 %v223, 4294901760
    %1746 = vmatpush1.msra.mxu0 %v1745
    %1747 = vmatprep.subr.mxu0 0.0
    %v1748 = vand.u32 %v224, 4294901760
    %1749 = vmatpush1.msra.mxu0 %v1748
    %1750 = vmatprep.subr.mxu0 0.0
    %v1751 = vand.u32 %v225, 4294901760
    %1752 = vmatpush1.msra.mxu0 %v1751
    %v1753 = vand.u32 %v157, 4294901760
    %v1754 = vsub.f32 %v157, %v1753
    %v1755 = vand.u32 %v1754, 4294901760
    %1756 = vmatprep.mubr.f32.mxu0 %v1755
    %v1757 = vand.u32 %v156, 4294901760
    %v1758 = vsub.f32 %v156, %v1757
    %v1759 = vand.u32 %v1758, 4294901760
    %1760 = vmatmul.mubr.f32.gmra.mrb[0].mxu0 %v1759
    %v1761 = vpop.f32.mrb[0].mxu0
    %v1762 = vadd.f32 %v1645, %v1761
    %v1763 = vpop.f32.mrb[0].mxu0
    %v1764 = vand.u32 %v161, 4294901760
    %v1765 = vsub.f32 %v161, %v1764
    %v1766 = vand.u32 %v1765, 4294901760
    %1767 = vmatprep.mubr.f32.mxu0 %v1766
    %v1768 = vand.u32 %v160, 4294901760
    %v1769 = vsub.f32 %v160, %v1768
    %v1770 = vand.u32 %v1769, 4294901760
    %1771 = vmatmul.mubr.f32.gmra.mrb[0].mxu0 %v1770
    %v1772 = vpop.f32.mrb[0].mxu0
    %v1773 = vadd.f32 %v1654, %v1772
    %v1774 = vpop.f32.mrb[0].mxu0
    %1775 = vdwg.mxu0
    %1776 = vmatprep.subr.mxu0 0.0
    %v1777 = vand.u32 %v194, 4294901760
    %v1778 = vsub.f32 %v194, %v1777
    %v1779 = vand.u32 %v1778, 4294901760
    %1780 = vmatpush1.msra.mxu0 %v1779
    %1781 = vmatprep.subr.mxu0 0.0
    %v1782 = vand.u32 %v195, 4294901760
    %v1783 = vsub.f32 %v195, %v1782
    %v1784 = vand.u32 %v1783, 4294901760
    %1785 = vmatpush1.msra.mxu0 %v1784
    %1786 = vmatprep.subr.mxu0 0.0
    %v1787 = vand.u32 %v196, 4294901760
    %v1788 = vsub.f32 %v196, %v1787
    %v1789 = vand.u32 %v1788, 4294901760
    %1790 = vmatpush1.msra.mxu0 %v1789
    %1791 = vmatprep.subr.mxu0 0.0
    %v1792 = vand.u32 %v197, 4294901760
    %v1793 = vsub.f32 %v197, %v1792
    %v1794 = vand.u32 %v1793, 4294901760
    %1795 = vmatpush1.msra.mxu0 %v1794
    %1796 = vmatprep.subr.mxu0 0.0
    %v1797 = vand.u32 %v198, 4294901760
    %v1798 = vsub.f32 %v198, %v1797
    %v1799 = vand.u32 %v1798, 4294901760
    %1800 = vmatpush1.msra.mxu0 %v1799
    %1801 = vmatprep.subr.mxu0 0.0
    %v1802 = vand.u32 %v199, 4294901760
    %v1803 = vsub.f32 %v199, %v1802
    %v1804 = vand.u32 %v1803, 4294901760
    %1805 = vmatpush1.msra.mxu0 %v1804
    %1806 = vmatprep.subr.mxu0 0.0
    %v1807 = vand.u32 %v200, 4294901760
    %v1808 = vsub.f32 %v200, %v1807
    %v1809 = vand.u32 %v1808, 4294901760
    %1810 = vmatpush1.msra.mxu0 %v1809
    %1811 = vmatprep.subr.mxu0 0.0
    %v1812 = vand.u32 %v201, 4294901760
    %v1813 = vsub.f32 %v201, %v1812
    %v1814 = vand.u32 %v1813, 4294901760
    %1815 = vmatpush1.msra.mxu0 %v1814
    %1816 = vmatprep.subr.mxu0 0.0
    %v1817 = vand.u32 %v202, 4294901760
    %v1818 = vsub.f32 %v202, %v1817
    %v1819 = vand.u32 %v1818, 4294901760
    %1820 = vmatpush1.msra.mxu0 %v1819
    %1821 = vmatprep.subr.mxu0 0.0
    %v1822 = vand.u32 %v203, 4294901760
    %v1823 = vsub.f32 %v203, %v1822
    %v1824 = vand.u32 %v1823, 4294901760
    %1825 = vmatpush1.msra.mxu0 %v1824
    %1826 = vmatprep.subr.mxu0 0.0
    %v1827 = vand.u32 %v204, 4294901760
    %v1828 = vsub.f32 %v204, %v1827
    %v1829 = vand.u32 %v1828, 4294901760
    %1830 = vmatpush1.msra.mxu0 %v1829
    %1831 = vmatprep.subr.mxu0 0.0
    %v1832 = vand.u32 %v205, 4294901760
    %v1833 = vsub.f32 %v205, %v1832
    %v1834 = vand.u32 %v1833, 4294901760
    %1835 = vmatpush1.msra.mxu0 %v1834
    %1836 = vmatprep.subr.mxu0 0.0
    %v1837 = vand.u32 %v206, 4294901760
    %v1838 = vsub.f32 %v206, %v1837
    %v1839 = vand.u32 %v1838, 4294901760
    %1840 = vmatpush1.msra.mxu0 %v1839
    %1841 = vmatprep.subr.mxu0 0.0
    %v1842 = vand.u32 %v207, 4294901760
    %v1843 = vsub.f32 %v207, %v1842
    %v1844 = vand.u32 %v1843, 4294901760
    %1845 = vmatpush1.msra.mxu0 %v1844
    %1846 = vmatprep.subr.mxu0 0.0
    %v1847 = vand.u32 %v208, 4294901760
    %v1848 = vsub.f32 %v208, %v1847
    %v1849 = vand.u32 %v1848, 4294901760
    %1850 = vmatpush1.msra.mxu0 %v1849
    %1851 = vmatprep.subr.mxu0 0.0
    %v1852 = vand.u32 %v209, 4294901760
    %v1853 = vsub.f32 %v209, %v1852
    %v1854 = vand.u32 %v1853, 4294901760
    %1855 = vmatpush1.msra.mxu0 %v1854
    %1856 = vmatprep.subr.mxu0 0.0
    %v1857 = vand.u32 %v210, 4294901760
    %v1858 = vsub.f32 %v210, %v1857
    %v1859 = vand.u32 %v1858, 4294901760
    %1860 = vmatpush1.msra.mxu0 %v1859
    %1861 = vmatprep.subr.mxu0 0.0
    %v1862 = vand.u32 %v211, 4294901760
    %v1863 = vsub.f32 %v211, %v1862
    %v1864 = vand.u32 %v1863, 4294901760
    %1865 = vmatpush1.msra.mxu0 %v1864
    %1866 = vmatprep.subr.mxu0 0.0
    %v1867 = vand.u32 %v212, 4294901760
    %v1868 = vsub.f32 %v212, %v1867
    %v1869 = vand.u32 %v1868, 4294901760
    %1870 = vmatpush1.msra.mxu0 %v1869
    %1871 = vmatprep.subr.mxu0 0.0
    %v1872 = vand.u32 %v213, 4294901760
    %v1873 = vsub.f32 %v213, %v1872
    %v1874 = vand.u32 %v1873, 4294901760
    %1875 = vmatpush1.msra.mxu0 %v1874
    %1876 = vmatprep.subr.mxu0 0.0
    %v1877 = vand.u32 %v214, 4294901760
    %v1878 = vsub.f32 %v214, %v1877
    %v1879 = vand.u32 %v1878, 4294901760
    %1880 = vmatpush1.msra.mxu0 %v1879
    %1881 = vmatprep.subr.mxu0 0.0
    %v1882 = vand.u32 %v215, 4294901760
    %v1883 = vsub.f32 %v215, %v1882
    %v1884 = vand.u32 %v1883, 4294901760
    %1885 = vmatpush1.msra.mxu0 %v1884
    %1886 = vmatprep.subr.mxu0 0.0
    %v1887 = vand.u32 %v216, 4294901760
    %v1888 = vsub.f32 %v216, %v1887
    %v1889 = vand.u32 %v1888, 4294901760
    %1890 = vmatpush1.msra.mxu0 %v1889
    %1891 = vmatprep.subr.mxu0 0.0
    %v1892 = vand.u32 %v217, 4294901760
    %v1893 = vsub.f32 %v217, %v1892
    %v1894 = vand.u32 %v1893, 4294901760
    %1895 = vmatpush1.msra.mxu0 %v1894
    %1896 = vmatprep.subr.mxu0 0.0
    %v1897 = vand.u32 %v218, 4294901760
    %v1898 = vsub.f32 %v218, %v1897
    %v1899 = vand.u32 %v1898, 4294901760
    %1900 = vmatpush1.msra.mxu0 %v1899
    %1901 = vmatprep.subr.mxu0 0.0
    %v1902 = vand.u32 %v219, 4294901760
    %v1903 = vsub.f32 %v219, %v1902
    %v1904 = vand.u32 %v1903, 4294901760
    %1905 = vmatpush1.msra.mxu0 %v1904
    %1906 = vmatprep.subr.mxu0 0.0
    %v1907 = vand.u32 %v220, 4294901760
    %v1908 = vsub.f32 %v220, %v1907
    %v1909 = vand.u32 %v1908, 4294901760
    %1910 = vmatpush1.msra.mxu0 %v1909
    %1911 = vmatprep.subr.mxu0 0.0
    %v1912 = vand.u32 %v221, 4294901760
    %v1913 = vsub.f32 %v221, %v1912
    %v1914 = vand.u32 %v1913, 4294901760
    %1915 = vmatpush1.msra.mxu0 %v1914
    %1916 = vmatprep.subr.mxu0 0.0
    %v1917 = vand.u32 %v222, 4294901760
    %v1918 = vsub.f32 %v222, %v1917
    %v1919 = vand.u32 %v1918, 4294901760
    %1920 = vmatpush1.msra.mxu0 %v1919
    %1921 = vmatprep.subr.mxu0 0.0
    %v1922 = vand.u32 %v223, 4294901760
    %v1923 = vsub.f32 %v223, %v1922
    %v1924 = vand.u32 %v1923, 4294901760
    %1925 = vmatpush1.msra.mxu0 %v1924
    %1926 = vmatprep.subr.mxu0 0.0
    %v1927 = vand.u32 %v224, 4294901760
    %v1928 = vsub.f32 %v224, %v1927
    %v1929 = vand.u32 %v1928, 4294901760
    %1930 = vmatpush1.msra.mxu0 %v1929
    %1931 = vmatprep.subr.mxu0 0.0
    %v1932 = vand.u32 %v225, 4294901760
    %v1933 = vsub.f32 %v225, %v1932
    %v1934 = vand.u32 %v1933, 4294901760
    %1935 = vmatpush1.msra.mxu0 %v1934
    %v1936 = vand.u32 %v157, 4294901760
    %1937 = vmatprep.mubr.f32.mxu0 %v1936
    %v1938 = vand.u32 %v156, 4294901760
    %1939 = vmatmul.mubr.f32.gmra.mrb[0].mxu0 %v1938
    %v1940 = vpop.f32.mrb[0].mxu0
    %v1941 = vadd.f32 %v1762, %v1940
    %v1942 = vpop.f32.mrb[0].mxu0
    %v1943 = vand.u32 %v161, 4294901760
    %1944 = vmatprep.mubr.f32.mxu0 %v1943
    %v1945 = vand.u32 %v160, 4294901760
    %1946 = vmatmul.mubr.f32.gmra.mrb[0].mxu0 %v1945
    %v1947 = vpop.f32.mrb[0].mxu0
    %v1948 = vadd.f32 %v1773, %v1947
    %v1949 = vpop.f32.mrb[0].mxu0
    %1950 = vdwg.mxu0
    %1951 = vmatprep.subr.mxu0 0.0
    %v1952 = vand.u32 %v194, 4294901760
    %1953 = vmatpush1.msra.mxu0 %v1952
    %1954 = vmatprep.subr.mxu0 0.0
    %v1955 = vand.u32 %v195, 4294901760
    %1956 = vmatpush1.msra.mxu0 %v1955
    %1957 = vmatprep.subr.mxu0 0.0
    %v1958 = vand.u32 %v196, 4294901760
    %1959 = vmatpush1.msra.mxu0 %v1958
    %1960 = vmatprep.subr.mxu0 0.0
    %v1961 = vand.u32 %v197, 4294901760
    %1962 = vmatpush1.msra.mxu0 %v1961
    %1963 = vmatprep.subr.mxu0 0.0
    %v1964 = vand.u32 %v198, 4294901760
    %1965 = vmatpush1.msra.mxu0 %v1964
    %1966 = vmatprep.subr.mxu0 0.0
    %v1967 = vand.u32 %v199, 4294901760
    %1968 = vmatpush1.msra.mxu0 %v1967
    %1969 = vmatprep.subr.mxu0 0.0
    %v1970 = vand.u32 %v200, 4294901760
    %1971 = vmatpush1.msra.mxu0 %v1970
    %1972 = vmatprep.subr.mxu0 0.0
    %v1973 = vand.u32 %v201, 4294901760
    %1974 = vmatpush1.msra.mxu0 %v1973
    %1975 = vmatprep.subr.mxu0 0.0
    %v1976 = vand.u32 %v202, 4294901760
    %1977 = vmatpush1.msra.mxu0 %v1976
    %1978 = vmatprep.subr.mxu0 0.0
    %v1979 = vand.u32 %v203, 4294901760
    %1980 = vmatpush1.msra.mxu0 %v1979
    %1981 = vmatprep.subr.mxu0 0.0
    %v1982 = vand.u32 %v204, 4294901760
    %1983 = vmatpush1.msra.mxu0 %v1982
    %1984 = vmatprep.subr.mxu0 0.0
    %v1985 = vand.u32 %v205, 4294901760
    %1986 = vmatpush1.msra.mxu0 %v1985
    %1987 = vmatprep.subr.mxu0 0.0
    %v1988 = vand.u32 %v206, 4294901760
    %1989 = vmatpush1.msra.mxu0 %v1988
    %1990 = vmatprep.subr.mxu0 0.0
    %v1991 = vand.u32 %v207, 4294901760
    %1992 = vmatpush1.msra.mxu0 %v1991
    %1993 = vmatprep.subr.mxu0 0.0
    %v1994 = vand.u32 %v208, 4294901760
    %1995 = vmatpush1.msra.mxu0 %v1994
    %1996 = vmatprep.subr.mxu0 0.0
    %v1997 = vand.u32 %v209, 4294901760
    %1998 = vmatpush1.msra.mxu0 %v1997
    %1999 = vmatprep.subr.mxu0 0.0
    %v2000 = vand.u32 %v210, 4294901760
    %2001 = vmatpush1.msra.mxu0 %v2000
    %2002 = vmatprep.subr.mxu0 0.0
    %v2003 = vand.u32 %v211, 4294901760
    %2004 = vmatpush1.msra.mxu0 %v2003
    %2005 = vmatprep.subr.mxu0 0.0
    %v2006 = vand.u32 %v212, 4294901760
    %2007 = vmatpush1.msra.mxu0 %v2006
    %2008 = vmatprep.subr.mxu0 0.0
    %v2009 = vand.u32 %v213, 4294901760
    %2010 = vmatpush1.msra.mxu0 %v2009
    %2011 = vmatprep.subr.mxu0 0.0
    %v2012 = vand.u32 %v214, 4294901760
    %2013 = vmatpush1.msra.mxu0 %v2012
    %2014 = vmatprep.subr.mxu0 0.0
    %v2015 = vand.u32 %v215, 4294901760
    %2016 = vmatpush1.msra.mxu0 %v2015
    %2017 = vmatprep.subr.mxu0 0.0
    %v2018 = vand.u32 %v216, 4294901760
    %2019 = vmatpush1.msra.mxu0 %v2018
    %2020 = vmatprep.subr.mxu0 0.0
    %v2021 = vand.u32 %v217, 4294901760
    %2022 = vmatpush1.msra.mxu0 %v2021
    %2023 = vmatprep.subr.mxu0 0.0
    %v2024 = vand.u32 %v218, 4294901760
    %2025 = vmatpush1.msra.mxu0 %v2024
    %2026 = vmatprep.subr.mxu0 0.0
    %v2027 = vand.u32 %v219, 4294901760
    %2028 = vmatpush1.msra.mxu0 %v2027
    %2029 = vmatprep.subr.mxu0 0.0
    %v2030 = vand.u32 %v220, 4294901760
    %2031 = vmatpush1.msra.mxu0 %v2030
    %2032 = vmatprep.subr.mxu0 0.0
    %v2033 = vand.u32 %v221, 4294901760
    %2034 = vmatpush1.msra.mxu0 %v2033
    %2035 = vmatprep.subr.mxu0 0.0
    %v2036 = vand.u32 %v222, 4294901760
    %2037 = vmatpush1.msra.mxu0 %v2036
    %2038 = vmatprep.subr.mxu0 0.0
    %v2039 = vand.u32 %v223, 4294901760
    %2040 = vmatpush1.msra.mxu0 %v2039
    %2041 = vmatprep.subr.mxu0 0.0
    %v2042 = vand.u32 %v224, 4294901760
    %2043 = vmatpush1.msra.mxu0 %v2042
    %2044 = vmatprep.subr.mxu0 0.0
    %v2045 = vand.u32 %v225, 4294901760
    %2046 = vmatpush1.msra.mxu0 %v2045
    %v2047 = vand.u32 %v157, 4294901760
    %2048 = vmatprep.mubr.f32.mxu0 %v2047
    %v2049 = vand.u32 %v156, 4294901760
    %2050 = vmatmul.mubr.f32.gmra.mrb[0].mxu0 %v2049
    %v2051 = vpop.f32.mrb[0].mxu0
    %v2052 = vadd.f32 %v1941, %v2051
    %v2053 = vpop.f32.mrb[0].mxu0
    %v2054 = vand.u32 %v161, 4294901760
    %2055 = vmatprep.mubr.f32.mxu0 %v2054
    %v2056 = vand.u32 %v160, 4294901760
    %2057 = vmatmul.mubr.f32.gmra.mrb[0].mxu0 %v2056
    %v2058 = vpop.f32.mrb[0].mxu0
    %v2059 = vadd.f32 %v1948, %v2058
    %v2060 = vpop.f32.mrb[0].mxu0
    %2061 = vdwg.mxu0
    %2062 = vst [vmem:[#allocation8] sm:$0xff] %v2052
    %2063 = vst [vmem:[#allocation8 + $0x8] sm:$0xff] %v2059
    // Predicated region
    $region26: #{tpu_custom_call.1} parent=1 // pred_check
      _
    $region27: #{tpu_custom_call.1} parent=1 // pred_check_branch
      %2065 = sbr.rel (0) target = $region29
    $region28: #{tpu_custom_call.1} parent=1 // pred_region
      %s2067 = ssub.s32 256, 256
      %2068 = vsyncadd [#allocation4], %s2067
      %s2069 = sshll.u32 [#allocation8], 4
      %s2070 = int_to_ptr.vmem [resolvable:$true] %s2069
      %2075 = dma.vmem_to_hbm [thread:$0]  %s2070, 256, %s3, [#allocation4], 128, 128, 8
    $region29: #{tpu_custom_call.1} parent=1 // pred_fallthru
      _
    // Predicated region
    $region30: #{tpu_custom_call.1} parent=1 // pred_check
      _
    $region31: #{tpu_custom_call.1} parent=1 // pred_check_branch
      %2077 = sbr.rel (0) target = $region33
    $region32: #{tpu_custom_call.1} parent=1 // pred_region
      %2078 = dma.done [#allocation4], 256
    $region33: #{tpu_custom_call.1} parent=1 // pred_fallthru
      _
    %2079 = vsyncpa [#allocation3], 1
    %2080 = vsyncpa [#allocation6], 1
    %2081 = vsyncpa [#allocation4], 1

</llo_original>
